<compile_context>
chip_gen: v7x
topology: tpu7x:2x2x1
jax: 0.10.0
libtpu: 0.0.40
codegen_flags: <defaults>
</compile_context>

<pallas_src>
import jax
import jax.numpy as jnp
from jax.experimental import pallas as pl
from jax.experimental.pallas import tpu as pltpu

_TWO_PI = 2.0 * 3.14159265358979323846


def _silu(h):
    # SiLU(x) = x * sigmoid(x); logistic lowers to the EUP (free bundle slot).
    return h * jax.lax.logistic(h)


def _make_pinn_kernel(num_linear, use_rff):
    """Kernel factory; layer count / RFF branch baked in statically."""

    def kernel(*refs):
        pos_ref = refs[0]            # (2, TILE) -- points on the lane dim
        out_ref = refs[-1]           # (out_dim, TILE)

        x_row = pos_ref[0:1, :]      # (1, TILE)
        y_row = pos_ref[1:2, :]      # (1, TILE)

        if use_rff:
            B2 = refs[1][...]        # (rff, 2), pre-scaled by 2*pi on host
            w0_sin = refs[2][...]    # (width, rff)
            w0_cos = refs[3][...]    # (width, rff)
            b0 = refs[4][...]        # (width, 1)
            rest = refs[5:-1]
            # RFF projection: K=2 contraction -> VPU broadcast FMAs.
            vp = B2[:, 0:1] * x_row + B2[:, 1:2] * y_row            # (rff, TILE)
            h = (jnp.dot(w0_sin, jnp.sin(vp), preferred_element_type=jnp.float32)
                 + jnp.dot(w0_cos, jnp.cos(vp), preferred_element_type=jnp.float32)
                 + b0)                                              # (width, TILE)
        else:
            w0 = refs[1][...]        # (width, 2)
            b0 = refs[2][...]        # (width, 1)
            rest = refs[3:-1]
            # K=2 first layer entirely on the VPU (skip a wasted MXU pass).
            h = w0[:, 0:1] * x_row + w0[:, 1:2] * y_row + b0        # (width, TILE)
        h = _silu(h)

        # Remaining Linear layers: weights are torch-native (out, in), so the
        # transposed layout is simply h <- W @ h + b (lane dim stays = points).
        num_rest = num_linear - 1
        for li in range(num_rest):
            w = rest[2 * li][...]
            b = rest[2 * li + 1][...]
            h = jnp.dot(w, h, preferred_element_type=jnp.float32) + b
            if li < num_rest - 1:
                h = _silu(h)

        out_ref[...] = h.astype(out_ref.dtype)

    return kernel


def _choose_tile(n, tile):
    """Pick a lane-aligned point tile; keep >= 2 grid steps when possible."""
    n_blocks = (n + 127) // 128
    t_blocks = max(1, min(max(1, tile // 128), n_blocks))
    if n_blocks >= 2:
        # At least two grid steps so v7x's two TensorCores both get work.
        t_blocks = min(t_blocks, max(1, n_blocks // 2))
    tile_eff = t_blocks * 128
    n_pad = ((n + tile_eff - 1) // tile_eff) * tile_eff
    return tile_eff, n_pad


def pinn_forward(x, y, params, *, tile=4096):
    """Pallas implementation of PINN.forward(x, y).

    x, y   : (N,) float32 coordinate vectors.
    params : {"ws": [w_l (out,in)], "bs": [b_l (out,1)], "B": (rff,2) or None}
    Returns uvp: (N, out_dim) float32.
    """
    ws, bs = params["ws"], params["bs"]
    B = params["B"]
    num_linear = len(ws)
    assert num_linear >= 2
    out_dim = ws[-1].shape[0]
    use_rff = B is not None
    rff_dim = B.shape[0] if use_rff else None

    n = x.shape[0]
    tile_eff, n_pad = _choose_tile(n, tile)
    grid = (n_pad // tile_eff,)

    # Transposed layout: pos is (2, N), points on the lane (last) dim.
    pos = jnp.stack((x, y)).astype(jnp.float32)
    if n_pad != n:
        pos = jnp.pad(pos, ((0, 0), (0, n_pad - n)))

    def full_spec(arr):
        # Whole (tiny) array resident in VMEM, same block every grid step.
        return pl.BlockSpec(arr.shape, lambda i: (0, 0))

    in_specs = [pl.BlockSpec((2, tile_eff), lambda i: (0, i))]
    args = [pos]
    if use_rff:
        w0 = ws[0].astype(jnp.float32)
        w0_sin = w0[:, :rff_dim]          # host-side split: no in-kernel lane
        w0_cos = w0[:, rff_dim:]          # slicing at unaligned offsets
        B2pi = (_TWO_PI * B).astype(jnp.float32)   # fold 2*pi into (rff, 2)
        for a in (B2pi, w0_sin, w0_cos, bs[0].astype(jnp.float32)):
            in_specs.append(full_spec(a))
            args.append(a)
    else:
        for a in (ws[0].astype(jnp.float32), bs[0].astype(jnp.float32)):
            in_specs.append(full_spec(a))
            args.append(a)
    for li in range(1, num_linear):
        for a in (ws[li].astype(jnp.float32), bs[li].astype(jnp.float32)):
            in_specs.append(full_spec(a))
            args.append(a)

    out_spec = pl.BlockSpec((out_dim, tile_eff), lambda i: (0, i))

    out = pl.pallas_call(
        _make_pinn_kernel(num_linear, use_rff),
        out_shape=jax.ShapeDtypeStruct((out_dim, n_pad), jnp.float32),
        grid_spec=pltpu.PrefetchScalarGridSpec(
            num_scalar_prefetch=0,
            grid=grid,
            in_specs=in_specs,
            out_specs=out_spec,
        ),
        compiler_params=pltpu.CompilerParams(
            dimension_semantics=("parallel",),
            vmem_limit_bytes=32 * 1024 * 1024,
        ),
    )(*args)

    # Back to the PyTorch convention: (N, out_dim).
    return out[:, :n].T


def init_params(key, in_dim=2, out_dim=3, depth=4, width=32, rff_dim=6,
                sigma=3.0):
    """Synthetic init matching create_net / PINN.__init__ shapes.

    Weights torch-native (out, in) with N(0, xavier_std); biases (out, 1) with
    the torch.nn.Linear default U(-1/sqrt(fan_in), 1/sqrt(fan_in)).
    """
    assert depth >= 2
    mlp_in = in_dim if rff_dim is None else 2 * rff_dim
    dims = []
    for i in range(depth):
        if i == 0:
            dims.append((mlp_in, width))
        elif i == depth - 1:
            dims.append((width, out_dim))
        else:
            dims.append((width, width))
    keys = jax.random.split(key, 2 * depth + 1)
    ws, bs = [], []
    for li, (din, dout) in enumerate(dims):
        std = (2.0 / (din + dout)) ** 0.5
        ws.append(std * jax.random.normal(keys[2 * li], (dout, din),
                                          dtype=jnp.float32))
        bound = 1.0 / (din ** 0.5)
        bs.append(jax.random.uniform(keys[2 * li + 1], (dout, 1),
                                     minval=-bound, maxval=bound,
                                     dtype=jnp.float32))
    B = None
    if rff_dim is not None:
        B = sigma * jax.random.normal(keys[-1], (rff_dim, in_dim),
                                      dtype=jnp.float32)
    return {"ws": ws, "bs": bs, "B": B}


def reference_forward(x, y, params):
    """Pure-JAX reference for correctness check (full f32 precision)."""
    pos = jnp.stack((x, y)).astype(jnp.float32)    # (2, N)
    B = params["B"]
    if B is not None:
        vp = _TWO_PI * (B[:, 0:1] * pos[0:1, :] + B[:, 1:2] * pos[1:2, :])
        feat = jnp.concatenate([jnp.sin(vp), jnp.cos(vp)], axis=0).T
    else:
        feat = pos.T
    h = feat
    ws, bs = params["ws"], params["bs"]
    for li, (w, b) in enumerate(zip(ws, bs)):
        h = jnp.dot(h, w.T, precision=jax.lax.Precision.HIGHEST) + b[:, 0]
        if li < len(ws) - 1:
            h = jax.nn.silu(h)
    return h


if __name__ == "__main__":
    key = jax.random.PRNGKey(0)
    k_p1, k_p2, k_x, k_y = jax.random.split(key, 4)

    # Small problem: N = 1000 collocation points (exercises padding + a
    # 2-step grid); MLP depth=4, width=32, out_dim=3 (u, v, p).
    N = 1000
    x = jax.random.uniform(k_x, (N,), dtype=jnp.float32)
    y = jax.random.uniform(k_y, (N,), dtype=jnp.float32)

    # (a) Module default path: rff_dim=6, sigma=3.
    params_rff = init_params(k_p1, in_dim=2, out_dim=3, depth=4, width=32,
                             rff_dim=6, sigma=3.0)
    uvp = jax.block_until_ready(pinn_forward(x, y, params_rff, tile=4096))
    ref = reference_forward(x, y, params_rff)
    assert uvp.shape == (N, 3)
    assert jnp.allclose(uvp, ref, atol=1e-4, rtol=1e-4), \
        float(jnp.max(jnp.abs(uvp - ref)))

    # (b) rff_dim=None path: pos = stack((x, y)).T fed straight to the MLP.
    params_plain = init_params(k_p2, in_dim=2, out_dim=3, depth=4, width=32,
                               rff_dim=None)
    uvp2 = jax.block_until_ready(pinn_forward(x, y, params_plain, tile=4096))
    ref2 = reference_forward(x, y, params_plain)
    assert uvp2.shape == (N, 3)
    assert jnp.allclose(uvp2, ref2, atol=1e-4, rtol=1e-4), \
        float(jnp.max(jnp.abs(uvp2 - ref2)))

    # TODO(synk): training loop, Adam optimizer, and finite-difference PDE
    # residual losses are host-side training logic, not part of the forward
    # kernel.
    print("KERNEL_OK")
</pallas_src>

<mosaic_0001>
module attributes {stable_mosaic.version = 11 : i64} {
  func.func @kernel(%arg0: i32, %arg1: memref<2x512xf32, #tpu.memory_space<vmem>>, %arg2: memref<6x2xf32, #tpu.memory_space<vmem>>, %arg3: memref<32x6xf32, #tpu.memory_space<vmem>>, %arg4: memref<32x6xf32, #tpu.memory_space<vmem>>, %arg5: memref<32x1xf32, #tpu.memory_space<vmem>>, %arg6: memref<32x32xf32, #tpu.memory_space<vmem>>, %arg7: memref<32x1xf32, #tpu.memory_space<vmem>>, %arg8: memref<32x32xf32, #tpu.memory_space<vmem>>, %arg9: memref<32x1xf32, #tpu.memory_space<vmem>>, %arg10: memref<3x32xf32, #tpu.memory_space<vmem>>, %arg11: memref<3x1xf32, #tpu.memory_space<vmem>>, %arg12: memref<3x512xf32, #tpu.memory_space<vmem>>) attributes {dimension_semantics = [#tpu.dimension_semantics<parallel>], iteration_bounds = array<i64: 2>, scalar_prefetch = 0 : i64, scratch_operands = 0 : i64, tpu.core_type = #tpu.core_type<tc>, window_params = [{transform_indices = @transform_0, window_bounds = array<i64: 2, 512>}, {pipeline_mode = #tpu.pipeline_mode<synchronous>, transform_indices = @transform_1, window_bounds = array<i64: 6, 2>}, {pipeline_mode = #tpu.pipeline_mode<synchronous>, transform_indices = @transform_2, window_bounds = array<i64: 32, 6>}, {pipeline_mode = #tpu.pipeline_mode<synchronous>, transform_indices = @transform_3, window_bounds = array<i64: 32, 6>}, {pipeline_mode = #tpu.pipeline_mode<synchronous>, transform_indices = @transform_4, window_bounds = array<i64: 32, 1>}, {pipeline_mode = #tpu.pipeline_mode<synchronous>, transform_indices = @transform_5, window_bounds = array<i64: 32, 32>}, {pipeline_mode = #tpu.pipeline_mode<synchronous>, transform_indices = @transform_6, window_bounds = array<i64: 32, 1>}, {pipeline_mode = #tpu.pipeline_mode<synchronous>, transform_indices = @transform_7, window_bounds = array<i64: 32, 32>}, {pipeline_mode = #tpu.pipeline_mode<synchronous>, transform_indices = @transform_8, window_bounds = array<i64: 32, 1>}, {pipeline_mode = #tpu.pipeline_mode<synchronous>, transform_indices = @transform_9, window_bounds = array<i64: 3, 32>}, {pipeline_mode = #tpu.pipeline_mode<synchronous>, transform_indices = @transform_10, window_bounds = array<i64: 3, 1>}, {transform_indices = @transform_11, window_bounds = array<i64: 3, 512>}]} {
    %c0 = arith.constant 0 : index
    %c0_0 = arith.constant 0 : index
    %0 = vector.load %arg1[%c0, %c0_0] : memref<2x512xf32, #tpu.memory_space<vmem>>, vector<1x512xf32>
    %c1 = arith.constant 1 : index
    %c0_1 = arith.constant 0 : index
    %1 = vector.load %arg1[%c1, %c0_1] : memref<2x512xf32, #tpu.memory_space<vmem>>, vector<1x512xf32>
    %c0_2 = arith.constant 0 : index
    %c0_3 = arith.constant 0 : index
    %2 = vector.load %arg2[%c0_2, %c0_3] : memref<6x2xf32, #tpu.memory_space<vmem>>, vector<6x2xf32>
    %c0_4 = arith.constant 0 : index
    %c0_5 = arith.constant 0 : index
    %3 = vector.load %arg3[%c0_4, %c0_5] : memref<32x6xf32, #tpu.memory_space<vmem>>, vector<32x6xf32>
    %c0_6 = arith.constant 0 : index
    %c0_7 = arith.constant 0 : index
    %4 = vector.load %arg4[%c0_6, %c0_7] : memref<32x6xf32, #tpu.memory_space<vmem>>, vector<32x6xf32>
    %c0_8 = arith.constant 0 : index
    %c0_9 = arith.constant 0 : index
    %5 = vector.load %arg5[%c0_8, %c0_9] : memref<32x1xf32, #tpu.memory_space<vmem>>, vector<32x1xf32>
    %6 = vector.extract_strided_slice %2 {offsets = [0, 0], sizes = [6, 1], strides = [1, 1]} : vector<6x2xf32> to vector<6x1xf32>
    %7 = vector.broadcast %6 : vector<6x1xf32> to vector<6x512xf32>
    %8 = vector.broadcast %0 : vector<1x512xf32> to vector<6x512xf32>
    %9 = arith.mulf %7, %8 : vector<6x512xf32>
    %10 = vector.extract_strided_slice %2 {offsets = [0, 1], sizes = [6, 1], strides = [1, 1]} : vector<6x2xf32> to vector<6x1xf32>
    %11 = vector.broadcast %10 : vector<6x1xf32> to vector<6x512xf32>
    %12 = vector.broadcast %1 : vector<1x512xf32> to vector<6x512xf32>
    %13 = arith.mulf %11, %12 : vector<6x512xf32>
    %14 = arith.addf %9, %13 : vector<6x512xf32>
    %15 = math.sin %14 : vector<6x512xf32>
    %cst = arith.constant dense<0.000000e+00> : vector<32x512xf32>
    %16 = tpu.matmul %3, %15, %cst {dimension_numbers = #tpu.dot_dimension_numbers<[1], [0], [0], [1], [0, 0, 1, 1], [], []>} : vector<32x6xf32>, vector<6x512xf32>, vector<32x512xf32> -> vector<32x512xf32>
    %17 = math.cos %14 : vector<6x512xf32>
    %cst_10 = arith.constant dense<0.000000e+00> : vector<32x512xf32>
    %18 = tpu.matmul %4, %17, %cst_10 {dimension_numbers = #tpu.dot_dimension_numbers<[1], [0], [0], [1], [0, 0, 1, 1], [], []>} : vector<32x6xf32>, vector<6x512xf32>, vector<32x512xf32> -> vector<32x512xf32>
    %19 = arith.addf %16, %18 : vector<32x512xf32>
    %20 = vector.broadcast %5 : vector<32x1xf32> to vector<32x512xf32>
    %21 = arith.addf %19, %20 : vector<32x512xf32>
    %22 = arith.negf %21 : vector<32x512xf32>
    %23 = math.exp %22 : vector<32x512xf32>
    %cst_11 = arith.constant 1.000000e+00 : f32
    %24 = vector.broadcast %cst_11 : f32 to vector<32x512xf32>
    %25 = arith.addf %24, %23 : vector<32x512xf32>
    %26 = arith.divf %24, %25 : vector<32x512xf32>
    %27 = arith.mulf %21, %26 : vector<32x512xf32>
    %c0_12 = arith.constant 0 : index
    %c0_13 = arith.constant 0 : index
    %28 = vector.load %arg6[%c0_12, %c0_13] : memref<32x32xf32, #tpu.memory_space<vmem>>, vector<32x32xf32>
    %c0_14 = arith.constant 0 : index
    %c0_15 = arith.constant 0 : index
    %29 = vector.load %arg7[%c0_14, %c0_15] : memref<32x1xf32, #tpu.memory_space<vmem>>, vector<32x1xf32>
    %cst_16 = arith.constant dense<0.000000e+00> : vector<32x512xf32>
    %30 = tpu.matmul %28, %27, %cst_16 {dimension_numbers = #tpu.dot_dimension_numbers<[1], [0], [0], [1], [0, 0, 1, 1], [], []>} : vector<32x32xf32>, vector<32x512xf32>, vector<32x512xf32> -> vector<32x512xf32>
    %31 = vector.broadcast %29 : vector<32x1xf32> to vector<32x512xf32>
    %32 = arith.addf %30, %31 : vector<32x512xf32>
    %33 = arith.negf %32 : vector<32x512xf32>
    %34 = math.exp %33 : vector<32x512xf32>
    %cst_17 = arith.constant 1.000000e+00 : f32
    %35 = vector.broadcast %cst_17 : f32 to vector<32x512xf32>
    %36 = arith.addf %35, %34 : vector<32x512xf32>
    %37 = arith.divf %35, %36 : vector<32x512xf32>
    %38 = arith.mulf %32, %37 : vector<32x512xf32>
    %c0_18 = arith.constant 0 : index
    %c0_19 = arith.constant 0 : index
    %39 = vector.load %arg8[%c0_18, %c0_19] : memref<32x32xf32, #tpu.memory_space<vmem>>, vector<32x32xf32>
    %c0_20 = arith.constant 0 : index
    %c0_21 = arith.constant 0 : index
    %40 = vector.load %arg9[%c0_20, %c0_21] : memref<32x1xf32, #tpu.memory_space<vmem>>, vector<32x1xf32>
    %cst_22 = arith.constant dense<0.000000e+00> : vector<32x512xf32>
    %41 = tpu.matmul %39, %38, %cst_22 {dimension_numbers = #tpu.dot_dimension_numbers<[1], [0], [0], [1], [0, 0, 1, 1], [], []>} : vector<32x32xf32>, vector<32x512xf32>, vector<32x512xf32> -> vector<32x512xf32>
    %42 = vector.broadcast %40 : vector<32x1xf32> to vector<32x512xf32>
    %43 = arith.addf %41, %42 : vector<32x512xf32>
    %44 = arith.negf %43 : vector<32x512xf32>
    %45 = math.exp %44 : vector<32x512xf32>
    %cst_23 = arith.constant 1.000000e+00 : f32
    %46 = vector.broadcast %cst_23 : f32 to vector<32x512xf32>
    %47 = arith.addf %46, %45 : vector<32x512xf32>
    %48 = arith.divf %46, %47 : vector<32x512xf32>
    %49 = arith.mulf %43, %48 : vector<32x512xf32>
    %c0_24 = arith.constant 0 : index
    %c0_25 = arith.constant 0 : index
    %50 = vector.load %arg10[%c0_24, %c0_25] : memref<3x32xf32, #tpu.memory_space<vmem>>, vector<3x32xf32>
    %c0_26 = arith.constant 0 : index
    %c0_27 = arith.constant 0 : index
    %51 = vector.load %arg11[%c0_26, %c0_27] : memref<3x1xf32, #tpu.memory_space<vmem>>, vector<3x1xf32>
    %cst_28 = arith.constant dense<0.000000e+00> : vector<3x512xf32>
    %52 = tpu.matmul %50, %49, %cst_28 {dimension_numbers = #tpu.dot_dimension_numbers<[1], [0], [0], [1], [0, 0, 1, 1], [], []>} : vector<3x32xf32>, vector<32x512xf32>, vector<3x512xf32> -> vector<3x512xf32>
    %53 = vector.broadcast %51 : vector<3x1xf32> to vector<3x512xf32>
    %54 = arith.addf %52, %53 : vector<3x512xf32>
    %c0_29 = arith.constant 0 : index
    %c0_30 = arith.constant 0 : index
    %55 = vector.load %arg12[%c0_29, %c0_30] : memref<3x512xf32, #tpu.memory_space<vmem>>, vector<3x512xf32>
    tpu.vector_store %arg12[%c0_29, %c0_30], %54 {strides = array<i32>} : memref<3x512xf32, #tpu.memory_space<vmem>>, vector<3x512xf32>,
    return
  }
  func.func @transform_0(%arg0: i32) -> (i32, i32) {
    %c0_i32 = arith.constant 0 : i32
    %c0_i32_0 = arith.constant 0 : i32
    return %c0_i32, %arg0 : i32, i32
  }
  func.func @transform_1(%arg0: i32) -> (i32, i32) {
    %c0_i32 = arith.constant 0 : i32
    %c0_i32_0 = arith.constant 0 : i32
    %c0_i32_1 = arith.constant 0 : i32
    return %c0_i32, %c0_i32_0 : i32, i32
  }
  func.func @transform_2(%arg0: i32) -> (i32, i32) {
    %c0_i32 = arith.constant 0 : i32
    %c0_i32_0 = arith.constant 0 : i32
    %c0_i32_1 = arith.constant 0 : i32
    return %c0_i32, %c0_i32_0 : i32, i32
  }
  func.func @transform_3(%arg0: i32) -> (i32, i32) {
    %c0_i32 = arith.constant 0 : i32
    %c0_i32_0 = arith.constant 0 : i32
    %c0_i32_1 = arith.constant 0 : i32
    return %c0_i32, %c0_i32_0 : i32, i32
  }
  func.func @transform_4(%arg0: i32) -> (i32, i32) {
    %c0_i32 = arith.constant 0 : i32
    %c0_i32_0 = arith.constant 0 : i32
    %c0_i32_1 = arith.constant 0 : i32
    return %c0_i32, %c0_i32_0 : i32, i32
  }
  func.func @transform_5(%arg0: i32) -> (i32, i32) {
    %c0_i32 = arith.constant 0 : i32
    %c0_i32_0 = arith.constant 0 : i32
    %c0_i32_1 = arith.constant 0 : i32
    return %c0_i32, %c0_i32_0 : i32, i32
  }
  func.func @transform_6(%arg0: i32) -> (i32, i32) {
    %c0_i32 = arith.constant 0 : i32
    %c0_i32_0 = arith.constant 0 : i32
    %c0_i32_1 = arith.constant 0 : i32
    return %c0_i32, %c0_i32_0 : i32, i32
  }
  func.func @transform_7(%arg0: i32) -> (i32, i32) {
    %c0_i32 = arith.constant 0 : i32
    %c0_i32_0 = arith.constant 0 : i32
    %c0_i32_1 = arith.constant 0 : i32
    return %c0_i32, %c0_i32_0 : i32, i32
  }
  func.func @transform_8(%arg0: i32) -> (i32, i32) {
    %c0_i32 = arith.constant 0 : i32
    %c0_i32_0 = arith.constant 0 : i32
    %c0_i32_1 = arith.constant 0 : i32
    return %c0_i32, %c0_i32_0 : i32, i32
  }
  func.func @transform_9(%arg0: i32) -> (i32, i32) {
    %c0_i32 = arith.constant 0 : i32
    %c0_i32_0 = arith.constant 0 : i32
    %c0_i32_1 = arith.constant 0 : i32
    return %c0_i32, %c0_i32_0 : i32, i32
  }
  func.func @transform_10(%arg0: i32) -> (i32, i32) {
    %c0_i32 = arith.constant 0 : i32
    %c0_i32_0 = arith.constant 0 : i32
    %c0_i32_1 = arith.constant 0 : i32
    return %c0_i32, %c0_i32_0 : i32, i32
  }
  func.func @transform_11(%arg0: i32) -> (i32, i32) {
    %c0_i32 = arith.constant 0 : i32
    %c0_i32_0 = arith.constant 0 : i32
    return %c0_i32, %arg0 : i32, i32
  }
}

</mosaic_0001>

<llo_original>
// kernel: tpu_custom_call.1
$region0: #{tpu_custom_call.1}
  #allocation0 [shape = 'u32[]', space=smem, size = 0x4, offset = 0x4, fixed_abs, tag = 'smem constant byte address 0x4 - core index']
  #allocation1 [shape = 'u32[144,128]{1,0:T(1,128)}', space=vmem, size = 0x12000, scoped, tag = 'internal scratch']
  %s0 = inlined_call_operand.vmem [shape: f32[2,1024], index: 0, kind: input, shape index: {}]
  %s1 = inlined_call_operand.vmem [shape: f32[6,2], index: 1, kind: input, shape index: {}]
  %s2 = inlined_call_operand.vmem [shape: f32[32,6], index: 2, kind: input, shape index: {}]
  %s3 = inlined_call_operand.vmem [shape: f32[32,6], index: 3, kind: input, shape index: {}]
  %s4 = inlined_call_operand.vmem [shape: f32[32,1], index: 4, kind: input, shape index: {}]
  %s5 = inlined_call_operand.vmem [shape: f32[32,32], index: 5, kind: input, shape index: {}]
  %s6 = inlined_call_operand.vmem [shape: f32[32,1], index: 6, kind: input, shape index: {}]
  %s7 = inlined_call_operand.vmem [shape: f32[32,32], index: 7, kind: input, shape index: {}]
  %s8 = inlined_call_operand.vmem [shape: f32[32,1], index: 8, kind: input, shape index: {}]
  %s9 = inlined_call_operand.vmem [shape: f32[3,32], index: 9, kind: input, shape index: {}]
  %s10 = inlined_call_operand.vmem [shape: f32[3,1], index: 10, kind: input, shape index: {}]
  %s11 = inlined_call_operand.hbm [shape: f32[3,1024], index: 11, kind: output, shape index: {}]
  %s12 = sld [smem:[#allocation0]]
  $region77: #{tpu_custom_call.1} parent=0
    _
  %s14 = ssub.s32 1, %s12
  %s15 = scalar_select 0, %s14, %s12
  $region1: #{tpu_custom_call.1} parent=0
    #allocation2 [shape = 'u8[16384]{0}', space=vmem, size = 0x4000, scoped, tag = 'output window, operand 0']
    #allocation3 [shape = 's32[2]{0}', space=sflag, size = 0x8, scoped, tag = 'scoped memory for tpu_custom_call.1']
    %16 = vsyncpa [#allocation3], 0
    %s17 = scalar_lea.sflag [#allocation3], 1
    %18 = vsyncpa %s17, 0
    loop: start=0, step=1, limit=4
    $region2: #{tpu_custom_call.1} parent=1 // loop_pre_header
      _
    $region3: #{tpu_custom_call.1} parent=1 // loop_header
      %s20 = sphi 0, %s24
      %p21 = scmp.ge.s32.totalorder %s20, 4
      %s30 = sphi 0, %s32
      %s33 = sphi 0, %s30
      %s34 = sphi 0, %s33
      %s50 = sphi 0, %s34
      %s54 = sphi 0, %s54
      %s56 = sphi 0, %s54
      %s57 = sphi 0, %s56
      %s71 = sphi 0, %s57
      %s75 = sphi 0, %s75
      %s77 = sphi 0, %s75
      %s78 = sphi 0, %s77
      %s92 = sphi 0, %s78
      %s96 = sphi 0, %s96
      %s98 = sphi 0, %s96
      %s99 = sphi 0, %s98
      %s113 = sphi 0, %s99
      %s117 = sphi 0, %s117
      %s119 = sphi 0, %s117
      %s120 = sphi 0, %s119
      %s134 = sphi 0, %s120
      %s138 = sphi 0, %s138
      %s140 = sphi 0, %s138
      %s141 = sphi 0, %s140
      %s155 = sphi 0, %s141
      %s159 = sphi 0, %s159
      %s161 = sphi 0, %s159
      %s162 = sphi 0, %s161
      %s176 = sphi 0, %s162
      %s180 = sphi 0, %s180
      %s182 = sphi 0, %s180
      %s183 = sphi 0, %s182
      %s197 = sphi 0, %s183
      %s201 = sphi 0, %s201
      %s203 = sphi 0, %s201
      %s204 = sphi 0, %s203
      %s218 = sphi 0, %s204
      %s222 = sphi 0, %s222
      %s224 = sphi 0, %s222
      %s225 = sphi 0, %s224
      %s239 = sphi 0, %s225
      %s243 = sphi 0, %s243
      %s245 = sphi 0, %s243
      %s246 = sphi 0, %s245
      %s260 = sphi 0, %s246
      %s266 = sphi 0, %s268
      %s269 = sphi 0, %s266
      %s270 = sphi 0, %s269
      %s286 = sphi 0, %s270
    $region4: #{tpu_custom_call.1} parent=1 // loop_header_branch
      %23 = sbr.rel (%p21) target = $region8
    $region5: #{tpu_custom_call.1} parent=1 // loop_body
      %s25 = ssub.s32 %s20, 1
      %s26 = ssub.s32 %s20, 2
      %s27 = sadd.s32 %s20, 1
      %s28 = ssub.s32 %s20, %s27
      %p29 = scmp.eq.s32.totalorder %s28, 0
      %s31 = sadd.s32 %s30, 1
      %s32 = scalar_select %p29, %s30, %s31
      %p35 = pneg %p29
      %p36 = scmp.eq.s32.totalorder %s20, 1
      %p37 = por %p35, %p36
      %p38 = scmp.ne.s32.totalorder %s30, %s33
      %p39 = scmp.eq.s32.totalorder %s20, 0
      %p40 = por %p38, %p39
      %p41 = scmp.ne.s32.totalorder %s30, %s33
      %p42 = scmp.eq.s32.totalorder %s25, 1
      %p43 = por %p41, %p42
      %p44 = scmp.ne.s32.totalorder %s33, %s34
      %p45 = scmp.eq.s32.totalorder %s25, 0
      %p46 = por %p44, %p45
      %p47 = scmp.ne.s32.totalorder %s33, %s34
      %p48 = scmp.eq.s32.totalorder %s26, 1
      %p49 = por %p47, %p48
      %p51 = scmp.ne.s32.totalorder %s34, %s50
      %p52 = scmp.eq.s32.totalorder %s26, 0
      %p53 = por %p51, %p52
      %s55 = sadd.s32 %s54, 1
      %p58 = scmp.eq.s32.totalorder %s20, 1
      %p59 = scmp.ne.s32.totalorder %s54, %s56
      %p60 = scmp.eq.s32.totalorder %s20, 0
      %p61 = por %p59, %p60
      %p62 = scmp.ne.s32.totalorder %s54, %s56
      %p63 = scmp.eq.s32.totalorder %s25, 1
      %p64 = por %p62, %p63
      %p65 = scmp.ne.s32.totalorder %s56, %s57
      %p66 = scmp.eq.s32.totalorder %s25, 0
      %p67 = por %p65, %p66
      %p68 = scmp.ne.s32.totalorder %s56, %s57
      %p69 = scmp.eq.s32.totalorder %s26, 1
      %p70 = por %p68, %p69
      %p72 = scmp.ne.s32.totalorder %s57, %s71
      %p73 = scmp.eq.s32.totalorder %s26, 0
      %p74 = por %p72, %p73
      %s76 = sadd.s32 %s75, 1
      %p79 = scmp.eq.s32.totalorder %s20, 1
      %p80 = scmp.ne.s32.totalorder %s75, %s77
      %p81 = scmp.eq.s32.totalorder %s20, 0
      %p82 = por %p80, %p81
      %p83 = scmp.ne.s32.totalorder %s75, %s77
      %p84 = scmp.eq.s32.totalorder %s25, 1
      %p85 = por %p83, %p84
      %p86 = scmp.ne.s32.totalorder %s77, %s78
      %p87 = scmp.eq.s32.totalorder %s25, 0
      %p88 = por %p86, %p87
      %p89 = scmp.ne.s32.totalorder %s77, %s78
      %p90 = scmp.eq.s32.totalorder %s26, 1
      %p91 = por %p89, %p90
      %p93 = scmp.ne.s32.totalorder %s78, %s92
      %p94 = scmp.eq.s32.totalorder %s26, 0
      %p95 = por %p93, %p94
      %s97 = sadd.s32 %s96, 1
      %p100 = scmp.eq.s32.totalorder %s20, 1
      %p101 = scmp.ne.s32.totalorder %s96, %s98
      %p102 = scmp.eq.s32.totalorder %s20, 0
      %p103 = por %p101, %p102
      %p104 = scmp.ne.s32.totalorder %s96, %s98
      %p105 = scmp.eq.s32.totalorder %s25, 1
      %p106 = por %p104, %p105
      %p107 = scmp.ne.s32.totalorder %s98, %s99
      %p108 = scmp.eq.s32.totalorder %s25, 0
      %p109 = por %p107, %p108
      %p110 = scmp.ne.s32.totalorder %s98, %s99
      %p111 = scmp.eq.s32.totalorder %s26, 1
      %p112 = por %p110, %p111
      %p114 = scmp.ne.s32.totalorder %s99, %s113
      %p115 = scmp.eq.s32.totalorder %s26, 0
      %p116 = por %p114, %p115
      %s118 = sadd.s32 %s117, 1
      %p121 = scmp.eq.s32.totalorder %s20, 1
      %p122 = scmp.ne.s32.totalorder %s117, %s119
      %p123 = scmp.eq.s32.totalorder %s20, 0
      %p124 = por %p122, %p123
      %p125 = scmp.ne.s32.totalorder %s117, %s119
      %p126 = scmp.eq.s32.totalorder %s25, 1
      %p127 = por %p125, %p126
      %p128 = scmp.ne.s32.totalorder %s119, %s120
      %p129 = scmp.eq.s32.totalorder %s25, 0
      %p130 = por %p128, %p129
      %p131 = scmp.ne.s32.totalorder %s119, %s120
      %p132 = scmp.eq.s32.totalorder %s26, 1
      %p133 = por %p131, %p132
      %p135 = scmp.ne.s32.totalorder %s120, %s134
      %p136 = scmp.eq.s32.totalorder %s26, 0
      %p137 = por %p135, %p136
      %s139 = sadd.s32 %s138, 1
      %p142 = scmp.eq.s32.totalorder %s20, 1
      %p143 = scmp.ne.s32.totalorder %s138, %s140
      %p144 = scmp.eq.s32.totalorder %s20, 0
      %p145 = por %p143, %p144
      %p146 = scmp.ne.s32.totalorder %s138, %s140
      %p147 = scmp.eq.s32.totalorder %s25, 1
      %p148 = por %p146, %p147
      %p149 = scmp.ne.s32.totalorder %s140, %s141
      %p150 = scmp.eq.s32.totalorder %s25, 0
      %p151 = por %p149, %p150
      %p152 = scmp.ne.s32.totalorder %s140, %s141
      %p153 = scmp.eq.s32.totalorder %s26, 1
      %p154 = por %p152, %p153
      %p156 = scmp.ne.s32.totalorder %s141, %s155
      %p157 = scmp.eq.s32.totalorder %s26, 0
      %p158 = por %p156, %p157
      %s160 = sadd.s32 %s159, 1
      %p163 = scmp.eq.s32.totalorder %s20, 1
      %p164 = scmp.ne.s32.totalorder %s159, %s161
      %p165 = scmp.eq.s32.totalorder %s20, 0
      %p166 = por %p164, %p165
      %p167 = scmp.ne.s32.totalorder %s159, %s161
      %p168 = scmp.eq.s32.totalorder %s25, 1
      %p169 = por %p167, %p168
      %p170 = scmp.ne.s32.totalorder %s161, %s162
      %p171 = scmp.eq.s32.totalorder %s25, 0
      %p172 = por %p170, %p171
      %p173 = scmp.ne.s32.totalorder %s161, %s162
      %p174 = scmp.eq.s32.totalorder %s26, 1
      %p175 = por %p173, %p174
      %p177 = scmp.ne.s32.totalorder %s162, %s176
      %p178 = scmp.eq.s32.totalorder %s26, 0
      %p179 = por %p177, %p178
      %s181 = sadd.s32 %s180, 1
      %p184 = scmp.eq.s32.totalorder %s20, 1
      %p185 = scmp.ne.s32.totalorder %s180, %s182
      %p186 = scmp.eq.s32.totalorder %s20, 0
      %p187 = por %p185, %p186
      %p188 = scmp.ne.s32.totalorder %s180, %s182
      %p189 = scmp.eq.s32.totalorder %s25, 1
      %p190 = por %p188, %p189
      %p191 = scmp.ne.s32.totalorder %s182, %s183
      %p192 = scmp.eq.s32.totalorder %s25, 0
      %p193 = por %p191, %p192
      %p194 = scmp.ne.s32.totalorder %s182, %s183
      %p195 = scmp.eq.s32.totalorder %s26, 1
      %p196 = por %p194, %p195
      %p198 = scmp.ne.s32.totalorder %s183, %s197
      %p199 = scmp.eq.s32.totalorder %s26, 0
      %p200 = por %p198, %p199
      %s202 = sadd.s32 %s201, 1
      %p205 = scmp.eq.s32.totalorder %s20, 1
      %p206 = scmp.ne.s32.totalorder %s201, %s203
      %p207 = scmp.eq.s32.totalorder %s20, 0
      %p208 = por %p206, %p207
      %p209 = scmp.ne.s32.totalorder %s201, %s203
      %p210 = scmp.eq.s32.totalorder %s25, 1
      %p211 = por %p209, %p210
      %p212 = scmp.ne.s32.totalorder %s203, %s204
      %p213 = scmp.eq.s32.totalorder %s25, 0
      %p214 = por %p212, %p213
      %p215 = scmp.ne.s32.totalorder %s203, %s204
      %p216 = scmp.eq.s32.totalorder %s26, 1
      %p217 = por %p215, %p216
      %p219 = scmp.ne.s32.totalorder %s204, %s218
      %p220 = scmp.eq.s32.totalorder %s26, 0
      %p221 = por %p219, %p220
      %s223 = sadd.s32 %s222, 1
      %p226 = scmp.eq.s32.totalorder %s20, 1
      %p227 = scmp.ne.s32.totalorder %s222, %s224
      %p228 = scmp.eq.s32.totalorder %s20, 0
      %p229 = por %p227, %p228
      %p230 = scmp.ne.s32.totalorder %s222, %s224
      %p231 = scmp.eq.s32.totalorder %s25, 1
      %p232 = por %p230, %p231
      %p233 = scmp.ne.s32.totalorder %s224, %s225
      %p234 = scmp.eq.s32.totalorder %s25, 0
      %p235 = por %p233, %p234
      %p236 = scmp.ne.s32.totalorder %s224, %s225
      %p237 = scmp.eq.s32.totalorder %s26, 1
      %p238 = por %p236, %p237
      %p240 = scmp.ne.s32.totalorder %s225, %s239
      %p241 = scmp.eq.s32.totalorder %s26, 0
      %p242 = por %p240, %p241
      %s244 = sadd.s32 %s243, 1
      %p247 = scmp.eq.s32.totalorder %s20, 1
      %p248 = scmp.ne.s32.totalorder %s243, %s245
      %p249 = scmp.eq.s32.totalorder %s20, 0
      %p250 = por %p248, %p249
      %p251 = scmp.ne.s32.totalorder %s243, %s245
      %p252 = scmp.eq.s32.totalorder %s25, 1
      %p253 = por %p251, %p252
      %p254 = scmp.ne.s32.totalorder %s245, %s246
      %p255 = scmp.eq.s32.totalorder %s25, 0
      %p256 = por %p254, %p255
      %p257 = scmp.ne.s32.totalorder %s245, %s246
      %p258 = scmp.eq.s32.totalorder %s26, 1
      %p259 = por %p257, %p258
      %p261 = scmp.ne.s32.totalorder %s246, %s260
      %p262 = scmp.eq.s32.totalorder %s26, 0
      %p263 = por %p261, %p262
      %s264 = ssub.s32 %s20, %s27
      %p265 = scmp.eq.s32.totalorder %s264, 0
      %s267 = sadd.s32 %s266, 1
      %s268 = scalar_select %p265, %s266, %s267
      %p271 = pneg %p265
      %p272 = scmp.eq.s32.totalorder %s20, 1
      %p273 = por %p271, %p272
      %p274 = scmp.ne.s32.totalorder %s266, %s269
      %p275 = scmp.eq.s32.totalorder %s20, 0
      %p276 = por %p274, %p275
      %p277 = scmp.ne.s32.totalorder %s266, %s269
      %p278 = scmp.eq.s32.totalorder %s25, 1
      %p279 = por %p277, %p278
      %p280 = scmp.ne.s32.totalorder %s269, %s270
      %p281 = scmp.eq.s32.totalorder %s25, 0
      %p282 = por %p280, %p281
      %p283 = scmp.ne.s32.totalorder %s269, %s270
      %p284 = scmp.eq.s32.totalorder %s26, 1
      %p285 = por %p283, %p284
      %p287 = scmp.ne.s32.totalorder %s270, %s286
      %p288 = scmp.eq.s32.totalorder %s26, 0
      %p289 = por %p287, %p288
      %p290 = scmp.le.s32.totalorder 1, %s20
      %p291 = scmp.lt.s32.totalorder %s20, 3
      %p292 = pnand %p290, %p291
      %p293 = pneg %p292
      // Predicated region
      $region9: #{tpu_custom_call.1} parent=5 // pred_check
        _
      $region10: #{tpu_custom_call.1} parent=5 // pred_check_branch
        %295 = sbr.rel (%p292) target = $region12
      $region11: #{tpu_custom_call.1} parent=5 // pred_region
        %s296 = ssub.s32 %s20, 1
        // Predicated region
        $region13: #{tpu_custom_call.1} parent=11 // pred_check
          %p297 = pneg %p67
        $region14: #{tpu_custom_call.1} parent=11 // pred_check_branch
          %299 = sbr.rel (%p297) target = $region16
        $region15: #{tpu_custom_call.1} parent=11 // pred_region
          _
        $region16: #{tpu_custom_call.1} parent=11 // pred_fallthru
          _
        // Predicated region
        $region17: #{tpu_custom_call.1} parent=11 // pred_check
          %p300 = pneg %p88
        $region18: #{tpu_custom_call.1} parent=11 // pred_check_branch
          %302 = sbr.rel (%p300) target = $region20
        $region19: #{tpu_custom_call.1} parent=11 // pred_region
          _
        $region20: #{tpu_custom_call.1} parent=11 // pred_fallthru
          _
        // Predicated region
        $region21: #{tpu_custom_call.1} parent=11 // pred_check
          %p303 = pneg %p109
        $region22: #{tpu_custom_call.1} parent=11 // pred_check_branch
          %305 = sbr.rel (%p303) target = $region24
        $region23: #{tpu_custom_call.1} parent=11 // pred_region
          _
        $region24: #{tpu_custom_call.1} parent=11 // pred_fallthru
          _
        // Predicated region
        $region25: #{tpu_custom_call.1} parent=11 // pred_check
          %p306 = pneg %p130
        $region26: #{tpu_custom_call.1} parent=11 // pred_check_branch
          %308 = sbr.rel (%p306) target = $region28
        $region27: #{tpu_custom_call.1} parent=11 // pred_region
          _
        $region28: #{tpu_custom_call.1} parent=11 // pred_fallthru
          _
        // Predicated region
        $region29: #{tpu_custom_call.1} parent=11 // pred_check
          %p309 = pneg %p151
        $region30: #{tpu_custom_call.1} parent=11 // pred_check_branch
          %311 = sbr.rel (%p309) target = $region32
        $region31: #{tpu_custom_call.1} parent=11 // pred_region
          _
        $region32: #{tpu_custom_call.1} parent=11 // pred_fallthru
          _
        // Predicated region
        $region33: #{tpu_custom_call.1} parent=11 // pred_check
          %p312 = pneg %p172
        $region34: #{tpu_custom_call.1} parent=11 // pred_check_branch
          %314 = sbr.rel (%p312) target = $region36
        $region35: #{tpu_custom_call.1} parent=11 // pred_region
          _
        $region36: #{tpu_custom_call.1} parent=11 // pred_fallthru
          _
        // Predicated region
        $region37: #{tpu_custom_call.1} parent=11 // pred_check
          %p315 = pneg %p193
        $region38: #{tpu_custom_call.1} parent=11 // pred_check_branch
          %317 = sbr.rel (%p315) target = $region40
        $region39: #{tpu_custom_call.1} parent=11 // pred_region
          _
        $region40: #{tpu_custom_call.1} parent=11 // pred_fallthru
          _
        // Predicated region
        $region41: #{tpu_custom_call.1} parent=11 // pred_check
          %p318 = pneg %p214
        $region42: #{tpu_custom_call.1} parent=11 // pred_check_branch
          %320 = sbr.rel (%p318) target = $region44
        $region43: #{tpu_custom_call.1} parent=11 // pred_region
          _
        $region44: #{tpu_custom_call.1} parent=11 // pred_fallthru
          _
        // Predicated region
        $region45: #{tpu_custom_call.1} parent=11 // pred_check
          %p321 = pneg %p235
        $region46: #{tpu_custom_call.1} parent=11 // pred_check_branch
          %323 = sbr.rel (%p321) target = $region48
        $region47: #{tpu_custom_call.1} parent=11 // pred_region
          _
        $region48: #{tpu_custom_call.1} parent=11 // pred_fallthru
          _
        // Predicated region
        $region49: #{tpu_custom_call.1} parent=11 // pred_check
          %p324 = pneg %p256
        $region50: #{tpu_custom_call.1} parent=11 // pred_check_branch
          %326 = sbr.rel (%p324) target = $region52
        $region51: #{tpu_custom_call.1} parent=11 // pred_region
          _
        $region52: #{tpu_custom_call.1} parent=11 // pred_fallthru
          _
      $region12: #{tpu_custom_call.1} parent=5 // pred_fallthru
        _
      %p327 = scmp.lt.s32.totalorder %s20, 2
      // Predicated region
      $region53: #{tpu_custom_call.1} parent=5 // pred_check
        %p328 = pneg %p327
      $region54: #{tpu_custom_call.1} parent=5 // pred_check_branch
        %330 = sbr.rel (%p328) target = $region56
      $region55: #{tpu_custom_call.1} parent=5 // pred_region
        // Predicated region
        $region57: #{tpu_custom_call.1} parent=55 // pred_check
          %p331 = pneg %p40
        $region58: #{tpu_custom_call.1} parent=55 // pred_check_branch
          %333 = sbr.rel (%p331) target = $region60
        $region59: #{tpu_custom_call.1} parent=55 // pred_region
          %s334 = smul.u32 4, %s20
          %p335 = scmp.lt.s32.totalorder %s334, 7
          %s336 = scalar_select %p335, %s334, 7
          %s337 = smul.addr %s336, 2
          %s338 = scalar_lea.vmem %s0, %s337
          %s339 = smul.u32 4, %s20
        $region60: #{tpu_custom_call.1} parent=55 // pred_fallthru
          _
      $region56: #{tpu_custom_call.1} parent=5 // pred_fallthru
        _
      %p340 = scmp.le.s32.totalorder 1, %s20
      %p341 = scmp.lt.s32.totalorder %s20, 3
      %p342 = pnand %p340, %p341
      %p343 = pneg %p342
      // Predicated region
      $region61: #{tpu_custom_call.1} parent=5 // pred_check
        _
      $region62: #{tpu_custom_call.1} parent=5 // pred_check_branch
        %345 = sbr.rel (%p342) target = $region64
      $region63: #{tpu_custom_call.1} parent=5 // pred_region
        %s346 = ssub.s32 %s20, 1
        %s347 = smul.u32 4, %s25
        %p348 = scmp.lt.s32.totalorder %s347, 7
        %s349 = scalar_select %p348, %s347, 7
        %s350 = smul.addr %s349, 2
        %s351 = scalar_lea.vmem %s0, %s350
        %p352 = pneg %p46
        %p353 = pneg %p43
        %p354 = pneg %p67
        %p355 = pneg %p64
        %p356 = pneg %p88
        %p357 = pneg %p85
        %p358 = pneg %p109
        %p359 = pneg %p106
        %p360 = pneg %p130
        %p361 = pneg %p127
        %p362 = pneg %p151
        %p363 = pneg %p148
        %p364 = pneg %p172
        %p365 = pneg %p169
        %p366 = pneg %p193
        %p367 = pneg %p190
        %p368 = pneg %p214
        %p369 = pneg %p211
        %p370 = pneg %p235
        %p371 = pneg %p232
        %p372 = pneg %p256
        %p373 = pneg %p253
        %p374 = pneg %p282
        %p375 = pneg %p279
        %s376 = sand.u32 %s269, 1
        %s377 = scalar_lea.sflag [#allocation3], %s376
        %s378 = sand.u32 %s269, 1
        %s379 = smul.addr %s378, 16
        %s380 = scalar_lea.vmem [#allocation2], %s379
        %s381 = smul.u32 4, %s25
        %p382 = scmp.lt.s32.totalorder %s381, 7
        %s383 = scalar_select %p382, %s381, 7
        %s384 = smul.addr %s383, 2
        %s385 = scalar_lea.vmem %s0, %s384
        %s386 = smul.u32 4, %s25
        %s387 = smul.u32 4, %s25
        %v388 = vld [vmem:[%s385] ss:$2 sm:$0xf]
        %s389 = scalar_lea.vmem %s385, 1
        %v390 = vld [vmem:[%s389] ss:$2 sm:$0xf]
        %v391 = vld [vmem:[%s1] sm:$0x3f]
        %v392 = vld [vmem:[%s2] sm:$0xff]
        %v393 = vld [vmem:[%s2 + $0x8] sm:$0xff]
        %v394 = vld [vmem:[%s2 + $0x10] sm:$0xff]
        %v395 = vld [vmem:[%s2 + $0x18] sm:$0xff]
        %v396 = vld [vmem:[%s3] sm:$0xff]
        %v397 = vld [vmem:[%s3 + $0x8] sm:$0xff]
        %v398 = vld [vmem:[%s3 + $0x10] sm:$0xff]
        %v399 = vld [vmem:[%s3 + $0x18] sm:$0xff]
        %v400 = vld [vmem:[%s4] sm:$0xff]
        %v401 = vld [vmem:[%s4 + $0x8] sm:$0xff]
        %v402 = vld [vmem:[%s4 + $0x10] sm:$0xff]
        %v403 = vld [vmem:[%s4 + $0x18] sm:$0xff]
        %405 = vset.pattern.permute.xlu0 0
        %406 = vperm.xlu0 %405, %v391
        %v407 = vpop.permute.xlu0 %406
        %v410 = vlaneseq
        %v411 = vshrl.u32 %v410, 7
        %v412 = vsub.s32 0, %v411
        %v413 = vrot.slane %v388, %v412
        %v414 = vlaneseq
        %v415 = vshrl.u32 %v414, 7
        %v416 = vsub.s32 1, %v415
        %v417 = vrot.slane %v388, %v416
        %v418 = vlaneseq
        %v419 = vshrl.u32 %v418, 7
        %v420 = vsub.s32 2, %v419
        %v421 = vrot.slane %v388, %v420
        %v422 = vlaneseq
        %v423 = vshrl.u32 %v422, 7
        %v424 = vsub.s32 3, %v423
        %v425 = vrot.slane %v388, %v424
        %v430 = vmul.f32 %v407, %v413
        %v431 = vmul.f32 %v407, %v417
        %v432 = vmul.f32 %v407, %v421
        %v433 = vmul.f32 %v407, %v425
        %434 = vset.pattern.permute.xlu0 1
        %435 = vperm.xlu0 %434, %v391
        %v436 = vpop.permute.xlu0 %435
        %v439 = vlaneseq
        %v440 = vshrl.u32 %v439, 7
        %v441 = vsub.s32 0, %v440
        %v442 = vrot.slane %v390, %v441
        %v443 = vlaneseq
        %v444 = vshrl.u32 %v443, 7
        %v445 = vsub.s32 1, %v444
        %v446 = vrot.slane %v390, %v445
        %v447 = vlaneseq
        %v448 = vshrl.u32 %v447, 7
        %v449 = vsub.s32 2, %v448
        %v450 = vrot.slane %v390, %v449
        %v451 = vlaneseq
        %v452 = vshrl.u32 %v451, 7
        %v453 = vsub.s32 3, %v452
        %v454 = vrot.slane %v390, %v453
        %v459 = vmul.f32 %v436, %v442
        %v460 = vmul.f32 %v436, %v446
        %v461 = vmul.f32 %v436, %v450
        %v462 = vmul.f32 %v436, %v454
        %v463 = vadd.f32 %v430, %v459
        %v464 = vadd.f32 %v431, %v460
        %v465 = vadd.f32 %v432, %v461
        %v466 = vadd.f32 %v433, %v462
        %v467 = vand.u32 2147483647, %v463
        %vm468 = vcmp.le.f32.partialorder %v467, 0.7853982
        %vm469 = vcmp.lt.s32.totalorder %v463, 0
        %v470 = vand.u32 %v463, 2139095040
        %v471 = vshrl.u32 %v470, 23
        %v472 = vsub.s32 %v471, 127
        %v473 = vand.u32 2147483647, %v463
        %v474 = vand.u32 %v473, 8388607
        %v475 = vor.u32 %v474, 8388608
        %v476 = vsub.s32 0, %v475
        %v477 = vadd.s32 %v472, 1
        %vm478 = vcmp.gt.s32.totalorder %v477, 0
        %v479 = vsel %vm478, %v477, 0
        %v480 = vshrl.u32 %v479, 5
        %v481 = vand.u32 %v479, 31
        %v482 = vsub.s32 32, %v481
        %v483 = vshrl.u32 683565275, %v482
        %v484 = vshll.u32 683565275, %v481
        %v485 = vshrl.u32 2475754826, %v482
        %v486 = vor.u32 %v484, %v485
        %v487 = vshll.u32 2475754826, %v481
        %v488 = vshrl.u32 2131351028, %v482
        %v489 = vor.u32 %v487, %v488
        %v490 = vshll.u32 2131351028, %v481
        %v491 = vshrl.u32 2102212464, %v482
        %v492 = vor.u32 %v490, %v491
        %v493 = vshll.u32 2102212464, %v481
        %v494 = vshrl.u32 920167782, %v482
        %v495 = vor.u32 %v493, %v494
        %v496 = vshll.u32 920167782, %v481
        %v497 = vshrl.u32 1326507024, %v482
        %v498 = vor.u32 %v496, %v497
        %vm499 = vcmp.lt.s32.totalorder %v480, 1
        %vm500 = vcmp.lt.s32.totalorder %v480, 2
        %vm501 = vcmp.lt.s32.totalorder %v480, 3
        %vm502 = vcmp.lt.s32.totalorder %v480, 4
        %v503 = vsel %vm499, %v483, %v486
        %v504 = vsel %vm502, %v492, 2102212464
        %v505 = vsel %vm501, %v489, %v504
        %v506 = vsel %vm500, %v503, %v505
        %v507 = vsel %vm499, %v486, %v489
        %v508 = vsel %vm502, %v495, 920167782
        %v509 = vsel %vm501, %v492, %v508
        %v510 = vsel %vm500, %v507, %v509
        %v511 = vsel %vm499, %v489, %v492
        %v512 = vsel %vm502, %v498, 1326507024
        %v513 = vsel %vm501, %v495, %v512
        %v514 = vsel %vm500, %v511, %v513
        %v515 = vshll.u32 %v475, 8
        %v516 = vmul.u32.u64.compose %v515, %v514
        %v517 = vextract.low.u32 %v516
        %v518 = vextract.high.u32 %v516
        %v519 = vmul.u32.u64.compose %v515, %v510
        %v520 = vextract.low.u32 %v519
        %v521 = vextract.high.u32 %v519
        %v522 = vmul.u32 %v515, %v506
        %v523 = vadd.s32 %v518, %v520
        %vm524 = vc.u32 %v518, %v520
        %v525 = vadd.s32 %v521, 1
        %v526 = vsel %vm524, %v525, %v521
        %v527 = vadd.s32 %v522, %v526
        %v528 = vadd.s32 %v527, 536870912
        %v529 = vshrl.u32 %v528, 30
        %v530 = vshll.u32 %v529, 30
        %v531 = vsub.s32 %v527, %v530
        %vm532 = vcmp.lt.s32.totalorder %v531, 0
        %v533 = vsub.s32 0, %v531
        %v534 = vsel %vm532, %v533, %v531
        %v535 = vclz %v534
        %v536 = vsub.s32 %v535, 2
        %vm537 = vcmp.gt.s32.totalorder 0, %v536
        %v538 = vsel %vm537, 0, %v536
        %v539 = vsub.s32 32, %v538
        %v540 = vshll.u32 %v531, %v538
        %v541 = vshrl.u32 %v523, %v539
        %v542 = vor.u32 %v540, %v541
        %v543 = vsub.s32 4294967266, %v538
        %v544 = vadd.s32 %v543, 127
        %v545 = vshll.u32 %v544, 23
        %v546 = vor.u32 4788187, %v545
        %v547 = vand.u32 2147483647, %v546
        %v549 = vcvt.s32.f32 %v542
        %v550 = vmul.f32 %v549, %v547
        %v551 = vxor.u32 %v550, 2147483648
        %v552 = vsel %vm469, %v551, %v550
        %v553 = vsub.s32 4, %v529
        %v554 = vsel %vm469, %v553, %v529
        %v555 = vsel %vm468, %v463, %v552
        %v556 = vsel %vm468, 0, %v554
        %v557 = vcosq.f32.pop %v555
        %v558 = vsinq.f32.pop %v555
        %vm559 = vweird.f32 %v463
        %v560 = vadd.s32 %v556, 3
        %v561 = vand.u32 %v560, 3
        %vm562 = vcmp.lt.s32.totalorder %v561, 2
        %vm563 = vcmp.eq.s32.totalorder %v561, 0
        %v564 = vxor.u32 %v558, 2147483648
        %v565 = vsel %vm563, %v557, %v564
        %vm566 = vcmp.eq.s32.totalorder %v561, 2
        %v567 = vxor.u32 %v557, 2147483648
        %v568 = vsel %vm566, %v567, %v558
        %v569 = vsel %vm562, %v565, %v568
        %v570 = vsel %vm559, nan, %v569
        %v571 = vand.u32 2147483647, %v464
        %vm572 = vcmp.le.f32.partialorder %v571, 0.7853982
        %vm573 = vcmp.lt.s32.totalorder %v464, 0
        %v574 = vand.u32 %v464, 2139095040
        %v575 = vshrl.u32 %v574, 23
        %v576 = vsub.s32 %v575, 127
        %v577 = vand.u32 2147483647, %v464
        %v578 = vand.u32 %v577, 8388607
        %v579 = vor.u32 %v578, 8388608
        %v580 = vsub.s32 0, %v579
        %v581 = vadd.s32 %v576, 1
        %vm582 = vcmp.gt.s32.totalorder %v581, 0
        %v583 = vsel %vm582, %v581, 0
        %v584 = vshrl.u32 %v583, 5
        %v585 = vand.u32 %v583, 31
        %v586 = vsub.s32 32, %v585
        %v587 = vshrl.u32 683565275, %v586
        %v588 = vshll.u32 683565275, %v585
        %v589 = vshrl.u32 2475754826, %v586
        %v590 = vor.u32 %v588, %v589
        %v591 = vshll.u32 2475754826, %v585
        %v592 = vshrl.u32 2131351028, %v586
        %v593 = vor.u32 %v591, %v592
        %v594 = vshll.u32 2131351028, %v585
        %v595 = vshrl.u32 2102212464, %v586
        %v596 = vor.u32 %v594, %v595
        %v597 = vshll.u32 2102212464, %v585
        %v598 = vshrl.u32 920167782, %v586
        %v599 = vor.u32 %v597, %v598
        %v600 = vshll.u32 920167782, %v585
        %v601 = vshrl.u32 1326507024, %v586
        %v602 = vor.u32 %v600, %v601
        %vm603 = vcmp.lt.s32.totalorder %v584, 1
        %vm604 = vcmp.lt.s32.totalorder %v584, 2
        %vm605 = vcmp.lt.s32.totalorder %v584, 3
        %vm606 = vcmp.lt.s32.totalorder %v584, 4
        %v607 = vsel %vm603, %v587, %v590
        %v608 = vsel %vm606, %v596, 2102212464
        %v609 = vsel %vm605, %v593, %v608
        %v610 = vsel %vm604, %v607, %v609
        %v611 = vsel %vm603, %v590, %v593
        %v612 = vsel %vm606, %v599, 920167782
        %v613 = vsel %vm605, %v596, %v612
        %v614 = vsel %vm604, %v611, %v613
        %v615 = vsel %vm603, %v593, %v596
        %v616 = vsel %vm606, %v602, 1326507024
        %v617 = vsel %vm605, %v599, %v616
        %v618 = vsel %vm604, %v615, %v617
        %v619 = vshll.u32 %v579, 8
        %v620 = vmul.u32.u64.compose %v619, %v618
        %v621 = vextract.low.u32 %v620
        %v622 = vextract.high.u32 %v620
        %v623 = vmul.u32.u64.compose %v619, %v614
        %v624 = vextract.low.u32 %v623
        %v625 = vextract.high.u32 %v623
        %v626 = vmul.u32 %v619, %v610
        %v627 = vadd.s32 %v622, %v624
        %vm628 = vc.u32 %v622, %v624
        %v629 = vadd.s32 %v625, 1
        %v630 = vsel %vm628, %v629, %v625
        %v631 = vadd.s32 %v626, %v630
        %v632 = vadd.s32 %v631, 536870912
        %v633 = vshrl.u32 %v632, 30
        %v634 = vshll.u32 %v633, 30
        %v635 = vsub.s32 %v631, %v634
        %vm636 = vcmp.lt.s32.totalorder %v635, 0
        %v637 = vsub.s32 0, %v635
        %v638 = vsel %vm636, %v637, %v635
        %v639 = vclz %v638
        %v640 = vsub.s32 %v639, 2
        %vm641 = vcmp.gt.s32.totalorder 0, %v640
        %v642 = vsel %vm641, 0, %v640
        %v643 = vsub.s32 32, %v642
        %v644 = vshll.u32 %v635, %v642
        %v645 = vshrl.u32 %v627, %v643
        %v646 = vor.u32 %v644, %v645
        %v647 = vsub.s32 4294967266, %v642
        %v648 = vadd.s32 %v647, 127
        %v649 = vshll.u32 %v648, 23
        %v650 = vor.u32 4788187, %v649
        %v651 = vand.u32 2147483647, %v650
        %v653 = vcvt.s32.f32 %v646
        %v654 = vmul.f32 %v653, %v651
        %v655 = vxor.u32 %v654, 2147483648
        %v656 = vsel %vm573, %v655, %v654
        %v657 = vsub.s32 4, %v633
        %v658 = vsel %vm573, %v657, %v633
        %v659 = vsel %vm572, %v464, %v656
        %v660 = vsel %vm572, 0, %v658
        %v661 = vcosq.f32.pop %v659
        %v662 = vsinq.f32.pop %v659
        %vm663 = vweird.f32 %v464
        %v664 = vadd.s32 %v660, 3
        %v665 = vand.u32 %v664, 3
        %vm666 = vcmp.lt.s32.totalorder %v665, 2
        %vm667 = vcmp.eq.s32.totalorder %v665, 0
        %v668 = vxor.u32 %v662, 2147483648
        %v669 = vsel %vm667, %v661, %v668
        %vm670 = vcmp.eq.s32.totalorder %v665, 2
        %v671 = vxor.u32 %v661, 2147483648
        %v672 = vsel %vm670, %v671, %v662
        %v673 = vsel %vm666, %v669, %v672
        %v674 = vsel %vm663, nan, %v673
        %v675 = vand.u32 2147483647, %v465
        %vm676 = vcmp.le.f32.partialorder %v675, 0.7853982
        %vm677 = vcmp.lt.s32.totalorder %v465, 0
        %v678 = vand.u32 %v465, 2139095040
        %v679 = vshrl.u32 %v678, 23
        %v680 = vsub.s32 %v679, 127
        %v681 = vand.u32 2147483647, %v465
        %v682 = vand.u32 %v681, 8388607
        %v683 = vor.u32 %v682, 8388608
        %v684 = vsub.s32 0, %v683
        %v685 = vadd.s32 %v680, 1
        %vm686 = vcmp.gt.s32.totalorder %v685, 0
        %v687 = vsel %vm686, %v685, 0
        %v688 = vshrl.u32 %v687, 5
        %v689 = vand.u32 %v687, 31
        %v690 = vsub.s32 32, %v689
        %v691 = vshrl.u32 683565275, %v690
        %v692 = vshll.u32 683565275, %v689
        %v693 = vshrl.u32 2475754826, %v690
        %v694 = vor.u32 %v692, %v693
        %v695 = vshll.u32 2475754826, %v689
        %v696 = vshrl.u32 2131351028, %v690
        %v697 = vor.u32 %v695, %v696
        %v698 = vshll.u32 2131351028, %v689
        %v699 = vshrl.u32 2102212464, %v690
        %v700 = vor.u32 %v698, %v699
        %v701 = vshll.u32 2102212464, %v689
        %v702 = vshrl.u32 920167782, %v690
        %v703 = vor.u32 %v701, %v702
        %v704 = vshll.u32 920167782, %v689
        %v705 = vshrl.u32 1326507024, %v690
        %v706 = vor.u32 %v704, %v705
        %vm707 = vcmp.lt.s32.totalorder %v688, 1
        %vm708 = vcmp.lt.s32.totalorder %v688, 2
        %vm709 = vcmp.lt.s32.totalorder %v688, 3
        %vm710 = vcmp.lt.s32.totalorder %v688, 4
        %v711 = vsel %vm707, %v691, %v694
        %v712 = vsel %vm710, %v700, 2102212464
        %v713 = vsel %vm709, %v697, %v712
        %v714 = vsel %vm708, %v711, %v713
        %v715 = vsel %vm707, %v694, %v697
        %v716 = vsel %vm710, %v703, 920167782
        %v717 = vsel %vm709, %v700, %v716
        %v718 = vsel %vm708, %v715, %v717
        %v719 = vsel %vm707, %v697, %v700
        %v720 = vsel %vm710, %v706, 1326507024
        %v721 = vsel %vm709, %v703, %v720
        %v722 = vsel %vm708, %v719, %v721
        %v723 = vshll.u32 %v683, 8
        %v724 = vmul.u32.u64.compose %v723, %v722
        %v725 = vextract.low.u32 %v724
        %v726 = vextract.high.u32 %v724
        %v727 = vmul.u32.u64.compose %v723, %v718
        %v728 = vextract.low.u32 %v727
        %v729 = vextract.high.u32 %v727
        %v730 = vmul.u32 %v723, %v714
        %v731 = vadd.s32 %v726, %v728
        %vm732 = vc.u32 %v726, %v728
        %v733 = vadd.s32 %v729, 1
        %v734 = vsel %vm732, %v733, %v729
        %v735 = vadd.s32 %v730, %v734
        %v736 = vadd.s32 %v735, 536870912
        %v737 = vshrl.u32 %v736, 30
        %v738 = vshll.u32 %v737, 30
        %v739 = vsub.s32 %v735, %v738
        %vm740 = vcmp.lt.s32.totalorder %v739, 0
        %v741 = vsub.s32 0, %v739
        %v742 = vsel %vm740, %v741, %v739
        %v743 = vclz %v742
        %v744 = vsub.s32 %v743, 2
        %vm745 = vcmp.gt.s32.totalorder 0, %v744
        %v746 = vsel %vm745, 0, %v744
        %v747 = vsub.s32 32, %v746
        %v748 = vshll.u32 %v739, %v746
        %v749 = vshrl.u32 %v731, %v747
        %v750 = vor.u32 %v748, %v749
        %v751 = vsub.s32 4294967266, %v746
        %v752 = vadd.s32 %v751, 127
        %v753 = vshll.u32 %v752, 23
        %v754 = vor.u32 4788187, %v753
        %v755 = vand.u32 2147483647, %v754
        %v757 = vcvt.s32.f32 %v750
        %v758 = vmul.f32 %v757, %v755
        %v759 = vxor.u32 %v758, 2147483648
        %v760 = vsel %vm677, %v759, %v758
        %v761 = vsub.s32 4, %v737
        %v762 = vsel %vm677, %v761, %v737
        %v763 = vsel %vm676, %v465, %v760
        %v764 = vsel %vm676, 0, %v762
        %v765 = vcosq.f32.pop %v763
        %v766 = vsinq.f32.pop %v763
        %vm767 = vweird.f32 %v465
        %v768 = vadd.s32 %v764, 3
        %v769 = vand.u32 %v768, 3
        %vm770 = vcmp.lt.s32.totalorder %v769, 2
        %vm771 = vcmp.eq.s32.totalorder %v769, 0
        %v772 = vxor.u32 %v766, 2147483648
        %v773 = vsel %vm771, %v765, %v772
        %vm774 = vcmp.eq.s32.totalorder %v769, 2
        %v775 = vxor.u32 %v765, 2147483648
        %v776 = vsel %vm774, %v775, %v766
        %v777 = vsel %vm770, %v773, %v776
        %v778 = vsel %vm767, nan, %v777
        %v779 = vand.u32 2147483647, %v466
        %vm780 = vcmp.le.f32.partialorder %v779, 0.7853982
        %vm781 = vcmp.lt.s32.totalorder %v466, 0
        %v782 = vand.u32 %v466, 2139095040
        %v783 = vshrl.u32 %v782, 23
        %v784 = vsub.s32 %v783, 127
        %v785 = vand.u32 2147483647, %v466
        %v786 = vand.u32 %v785, 8388607
        %v787 = vor.u32 %v786, 8388608
        %v788 = vsub.s32 0, %v787
        %v789 = vadd.s32 %v784, 1
        %vm790 = vcmp.gt.s32.totalorder %v789, 0
        %v791 = vsel %vm790, %v789, 0
        %v792 = vshrl.u32 %v791, 5
        %v793 = vand.u32 %v791, 31
        %v794 = vsub.s32 32, %v793
        %v795 = vshrl.u32 683565275, %v794
        %v796 = vshll.u32 683565275, %v793
        %v797 = vshrl.u32 2475754826, %v794
        %v798 = vor.u32 %v796, %v797
        %v799 = vshll.u32 2475754826, %v793
        %v800 = vshrl.u32 2131351028, %v794
        %v801 = vor.u32 %v799, %v800
        %v802 = vshll.u32 2131351028, %v793
        %v803 = vshrl.u32 2102212464, %v794
        %v804 = vor.u32 %v802, %v803
        %v805 = vshll.u32 2102212464, %v793
        %v806 = vshrl.u32 920167782, %v794
        %v807 = vor.u32 %v805, %v806
        %v808 = vshll.u32 920167782, %v793
        %v809 = vshrl.u32 1326507024, %v794
        %v810 = vor.u32 %v808, %v809
        %vm811 = vcmp.lt.s32.totalorder %v792, 1
        %vm812 = vcmp.lt.s32.totalorder %v792, 2
        %vm813 = vcmp.lt.s32.totalorder %v792, 3
        %vm814 = vcmp.lt.s32.totalorder %v792, 4
        %v815 = vsel %vm811, %v795, %v798
        %v816 = vsel %vm814, %v804, 2102212464
        %v817 = vsel %vm813, %v801, %v816
        %v818 = vsel %vm812, %v815, %v817
        %v819 = vsel %vm811, %v798, %v801
        %v820 = vsel %vm814, %v807, 920167782
        %v821 = vsel %vm813, %v804, %v820
        %v822 = vsel %vm812, %v819, %v821
        %v823 = vsel %vm811, %v801, %v804
        %v824 = vsel %vm814, %v810, 1326507024
        %v825 = vsel %vm813, %v807, %v824
        %v826 = vsel %vm812, %v823, %v825
        %v827 = vshll.u32 %v787, 8
        %v828 = vmul.u32.u64.compose %v827, %v826
        %v829 = vextract.low.u32 %v828
        %v830 = vextract.high.u32 %v828
        %v831 = vmul.u32.u64.compose %v827, %v822
        %v832 = vextract.low.u32 %v831
        %v833 = vextract.high.u32 %v831
        %v834 = vmul.u32 %v827, %v818
        %v835 = vadd.s32 %v830, %v832
        %vm836 = vc.u32 %v830, %v832
        %v837 = vadd.s32 %v833, 1
        %v838 = vsel %vm836, %v837, %v833
        %v839 = vadd.s32 %v834, %v838
        %v840 = vadd.s32 %v839, 536870912
        %v841 = vshrl.u32 %v840, 30
        %v842 = vshll.u32 %v841, 30
        %v843 = vsub.s32 %v839, %v842
        %vm844 = vcmp.lt.s32.totalorder %v843, 0
        %v845 = vsub.s32 0, %v843
        %v846 = vsel %vm844, %v845, %v843
        %v847 = vclz %v846
        %v848 = vsub.s32 %v847, 2
        %vm849 = vcmp.gt.s32.totalorder 0, %v848
        %v850 = vsel %vm849, 0, %v848
        %v851 = vsub.s32 32, %v850
        %v852 = vshll.u32 %v843, %v850
        %v853 = vshrl.u32 %v835, %v851
        %v854 = vor.u32 %v852, %v853
        %v855 = vsub.s32 4294967266, %v850
        %v856 = vadd.s32 %v855, 127
        %v857 = vshll.u32 %v856, 23
        %v858 = vor.u32 4788187, %v857
        %v859 = vand.u32 2147483647, %v858
        %v861 = vcvt.s32.f32 %v854
        %v862 = vmul.f32 %v861, %v859
        %v863 = vxor.u32 %v862, 2147483648
        %v864 = vsel %vm781, %v863, %v862
        %v865 = vsub.s32 4, %v841
        %v866 = vsel %vm781, %v865, %v841
        %v867 = vsel %vm780, %v466, %v864
        %v868 = vsel %vm780, 0, %v866
        %v869 = vcosq.f32.pop %v867
        %v870 = vsinq.f32.pop %v867
        %vm871 = vweird.f32 %v466
        %v872 = vadd.s32 %v868, 3
        %v873 = vand.u32 %v872, 3
        %vm874 = vcmp.lt.s32.totalorder %v873, 2
        %vm875 = vcmp.eq.s32.totalorder %v873, 0
        %v876 = vxor.u32 %v870, 2147483648
        %v877 = vsel %vm875, %v869, %v876
        %vm878 = vcmp.eq.s32.totalorder %v873, 2
        %v879 = vxor.u32 %v869, 2147483648
        %v880 = vsel %vm878, %v879, %v870
        %v881 = vsel %vm874, %v877, %v880
        %v882 = vsel %vm871, nan, %v881
        %v883 = vand.u32 2147483647, %v463
        %vm884 = vcmp.le.f32.partialorder %v883, 0.7853982
        %vm885 = vcmp.lt.s32.totalorder %v463, 0
        %v886 = vand.u32 %v463, 2139095040
        %v887 = vshrl.u32 %v886, 23
        %v888 = vsub.s32 %v887, 127
        %v889 = vand.u32 2147483647, %v463
        %v890 = vand.u32 %v889, 8388607
        %v891 = vor.u32 %v890, 8388608
        %v892 = vsub.s32 0, %v891
        %v893 = vadd.s32 %v888, 1
        %vm894 = vcmp.gt.s32.totalorder %v893, 0
        %v895 = vsel %vm894, %v893, 0
        %v896 = vshrl.u32 %v895, 5
        %v897 = vand.u32 %v895, 31
        %v898 = vsub.s32 32, %v897
        %v899 = vshrl.u32 683565275, %v898
        %v900 = vshll.u32 683565275, %v897
        %v901 = vshrl.u32 2475754826, %v898
        %v902 = vor.u32 %v900, %v901
        %v903 = vshll.u32 2475754826, %v897
        %v904 = vshrl.u32 2131351028, %v898
        %v905 = vor.u32 %v903, %v904
        %v906 = vshll.u32 2131351028, %v897
        %v907 = vshrl.u32 2102212464, %v898
        %v908 = vor.u32 %v906, %v907
        %v909 = vshll.u32 2102212464, %v897
        %v910 = vshrl.u32 920167782, %v898
        %v911 = vor.u32 %v909, %v910
        %v912 = vshll.u32 920167782, %v897
        %v913 = vshrl.u32 1326507024, %v898
        %v914 = vor.u32 %v912, %v913
        %vm915 = vcmp.lt.s32.totalorder %v896, 1
        %vm916 = vcmp.lt.s32.totalorder %v896, 2
        %vm917 = vcmp.lt.s32.totalorder %v896, 3
        %vm918 = vcmp.lt.s32.totalorder %v896, 4
        %v919 = vsel %vm915, %v899, %v902
        %v920 = vsel %vm918, %v908, 2102212464
        %v921 = vsel %vm917, %v905, %v920
        %v922 = vsel %vm916, %v919, %v921
        %v923 = vsel %vm915, %v902, %v905
        %v924 = vsel %vm918, %v911, 920167782
        %v925 = vsel %vm917, %v908, %v924
        %v926 = vsel %vm916, %v923, %v925
        %v927 = vsel %vm915, %v905, %v908
        %v928 = vsel %vm918, %v914, 1326507024
        %v929 = vsel %vm917, %v911, %v928
        %v930 = vsel %vm916, %v927, %v929
        %v931 = vshll.u32 %v891, 8
        %v932 = vmul.u32.u64.compose %v931, %v930
        %v933 = vextract.low.u32 %v932
        %v934 = vextract.high.u32 %v932
        %v935 = vmul.u32.u64.compose %v931, %v926
        %v936 = vextract.low.u32 %v935
        %v937 = vextract.high.u32 %v935
        %v938 = vmul.u32 %v931, %v922
        %v939 = vadd.s32 %v934, %v936
        %vm940 = vc.u32 %v934, %v936
        %v941 = vadd.s32 %v937, 1
        %v942 = vsel %vm940, %v941, %v937
        %v943 = vadd.s32 %v938, %v942
        %v944 = vadd.s32 %v943, 536870912
        %v945 = vshrl.u32 %v944, 30
        %v946 = vshll.u32 %v945, 30
        %v947 = vsub.s32 %v943, %v946
        %vm948 = vcmp.lt.s32.totalorder %v947, 0
        %v949 = vsub.s32 0, %v947
        %v950 = vsel %vm948, %v949, %v947
        %v951 = vclz %v950
        %v952 = vsub.s32 %v951, 2
        %vm953 = vcmp.gt.s32.totalorder 0, %v952
        %v954 = vsel %vm953, 0, %v952
        %v955 = vsub.s32 32, %v954
        %v956 = vshll.u32 %v947, %v954
        %v957 = vshrl.u32 %v939, %v955
        %v958 = vor.u32 %v956, %v957
        %v959 = vsub.s32 4294967266, %v954
        %v960 = vadd.s32 %v959, 127
        %v961 = vshll.u32 %v960, 23
        %v962 = vor.u32 4788187, %v961
        %v963 = vand.u32 2147483647, %v962
        %v965 = vcvt.s32.f32 %v958
        %v966 = vmul.f32 %v965, %v963
        %v967 = vxor.u32 %v966, 2147483648
        %v968 = vsel %vm885, %v967, %v966
        %v969 = vsub.s32 4, %v945
        %v970 = vsel %vm885, %v969, %v945
        %v971 = vsel %vm884, %v463, %v968
        %v972 = vsel %vm884, 0, %v970
        %v973 = vcosq.f32.pop %v971
        %v974 = vsinq.f32.pop %v971
        %vm975 = vweird.f32 %v463
        %v976 = vand.u32 %v972, 3
        %vm977 = vcmp.lt.s32.totalorder %v976, 2
        %vm978 = vcmp.eq.s32.totalorder %v976, 0
        %v979 = vxor.u32 %v974, 2147483648
        %v980 = vsel %vm978, %v973, %v979
        %vm981 = vcmp.eq.s32.totalorder %v976, 2
        %v982 = vxor.u32 %v973, 2147483648
        %v983 = vsel %vm981, %v982, %v974
        %v984 = vsel %vm977, %v980, %v983
        %v985 = vsel %vm975, nan, %v984
        %v986 = vand.u32 2147483647, %v464
        %vm987 = vcmp.le.f32.partialorder %v986, 0.7853982
        %vm988 = vcmp.lt.s32.totalorder %v464, 0
        %v989 = vand.u32 %v464, 2139095040
        %v990 = vshrl.u32 %v989, 23
        %v991 = vsub.s32 %v990, 127
        %v992 = vand.u32 2147483647, %v464
        %v993 = vand.u32 %v992, 8388607
        %v994 = vor.u32 %v993, 8388608
        %v995 = vsub.s32 0, %v994
        %v996 = vadd.s32 %v991, 1
        %vm997 = vcmp.gt.s32.totalorder %v996, 0
        %v998 = vsel %vm997, %v996, 0
        %v999 = vshrl.u32 %v998, 5
        %v1000 = vand.u32 %v998, 31
        %v1001 = vsub.s32 32, %v1000
        %v1002 = vshrl.u32 683565275, %v1001
        %v1003 = vshll.u32 683565275, %v1000
        %v1004 = vshrl.u32 2475754826, %v1001
        %v1005 = vor.u32 %v1003, %v1004
        %v1006 = vshll.u32 2475754826, %v1000
        %v1007 = vshrl.u32 2131351028, %v1001
        %v1008 = vor.u32 %v1006, %v1007
        %v1009 = vshll.u32 2131351028, %v1000
        %v1010 = vshrl.u32 2102212464, %v1001
        %v1011 = vor.u32 %v1009, %v1010
        %v1012 = vshll.u32 2102212464, %v1000
        %v1013 = vshrl.u32 920167782, %v1001
        %v1014 = vor.u32 %v1012, %v1013
        %v1015 = vshll.u32 920167782, %v1000
        %v1016 = vshrl.u32 1326507024, %v1001
        %v1017 = vor.u32 %v1015, %v1016
        %vm1018 = vcmp.lt.s32.totalorder %v999, 1
        %vm1019 = vcmp.lt.s32.totalorder %v999, 2
        %vm1020 = vcmp.lt.s32.totalorder %v999, 3
        %vm1021 = vcmp.lt.s32.totalorder %v999, 4
        %v1022 = vsel %vm1018, %v1002, %v1005
        %v1023 = vsel %vm1021, %v1011, 2102212464
        %v1024 = vsel %vm1020, %v1008, %v1023
        %v1025 = vsel %vm1019, %v1022, %v1024
        %v1026 = vsel %vm1018, %v1005, %v1008
        %v1027 = vsel %vm1021, %v1014, 920167782
        %v1028 = vsel %vm1020, %v1011, %v1027
        %v1029 = vsel %vm1019, %v1026, %v1028
        %v1030 = vsel %vm1018, %v1008, %v1011
        %v1031 = vsel %vm1021, %v1017, 1326507024
        %v1032 = vsel %vm1020, %v1014, %v1031
        %v1033 = vsel %vm1019, %v1030, %v1032
        %v1034 = vshll.u32 %v994, 8
        %v1035 = vmul.u32.u64.compose %v1034, %v1033
        %v1036 = vextract.low.u32 %v1035
        %v1037 = vextract.high.u32 %v1035
        %v1038 = vmul.u32.u64.compose %v1034, %v1029
        %v1039 = vextract.low.u32 %v1038
        %v1040 = vextract.high.u32 %v1038
        %v1041 = vmul.u32 %v1034, %v1025
        %v1042 = vadd.s32 %v1037, %v1039
        %vm1043 = vc.u32 %v1037, %v1039
        %v1044 = vadd.s32 %v1040, 1
        %v1045 = vsel %vm1043, %v1044, %v1040
        %v1046 = vadd.s32 %v1041, %v1045
        %v1047 = vadd.s32 %v1046, 536870912
        %v1048 = vshrl.u32 %v1047, 30
        %v1049 = vshll.u32 %v1048, 30
        %v1050 = vsub.s32 %v1046, %v1049
        %vm1051 = vcmp.lt.s32.totalorder %v1050, 0
        %v1052 = vsub.s32 0, %v1050
        %v1053 = vsel %vm1051, %v1052, %v1050
        %v1054 = vclz %v1053
        %v1055 = vsub.s32 %v1054, 2
        %vm1056 = vcmp.gt.s32.totalorder 0, %v1055
        %v1057 = vsel %vm1056, 0, %v1055
        %v1058 = vsub.s32 32, %v1057
        %v1059 = vshll.u32 %v1050, %v1057
        %v1060 = vshrl.u32 %v1042, %v1058
        %v1061 = vor.u32 %v1059, %v1060
        %v1062 = vsub.s32 4294967266, %v1057
        %v1063 = vadd.s32 %v1062, 127
        %v1064 = vshll.u32 %v1063, 23
        %v1065 = vor.u32 4788187, %v1064
        %v1066 = vand.u32 2147483647, %v1065
        %v1068 = vcvt.s32.f32 %v1061
        %v1069 = vmul.f32 %v1068, %v1066
        %v1070 = vxor.u32 %v1069, 2147483648
        %v1071 = vsel %vm988, %v1070, %v1069
        %v1072 = vsub.s32 4, %v1048
        %v1073 = vsel %vm988, %v1072, %v1048
        %v1074 = vsel %vm987, %v464, %v1071
        %v1075 = vsel %vm987, 0, %v1073
        %v1076 = vcosq.f32.pop %v1074
        %v1077 = vsinq.f32.pop %v1074
        %vm1078 = vweird.f32 %v464
        %v1079 = vand.u32 %v1075, 3
        %vm1080 = vcmp.lt.s32.totalorder %v1079, 2
        %vm1081 = vcmp.eq.s32.totalorder %v1079, 0
        %v1082 = vxor.u32 %v1077, 2147483648
        %v1083 = vsel %vm1081, %v1076, %v1082
        %vm1084 = vcmp.eq.s32.totalorder %v1079, 2
        %v1085 = vxor.u32 %v1076, 2147483648
        %v1086 = vsel %vm1084, %v1085, %v1077
        %v1087 = vsel %vm1080, %v1083, %v1086
        %v1088 = vsel %vm1078, nan, %v1087
        %v1089 = vand.u32 2147483647, %v465
        %vm1090 = vcmp.le.f32.partialorder %v1089, 0.7853982
        %vm1091 = vcmp.lt.s32.totalorder %v465, 0
        %v1092 = vand.u32 %v465, 2139095040
        %v1093 = vshrl.u32 %v1092, 23
        %v1094 = vsub.s32 %v1093, 127
        %v1095 = vand.u32 2147483647, %v465
        %v1096 = vand.u32 %v1095, 8388607
        %v1097 = vor.u32 %v1096, 8388608
        %v1098 = vsub.s32 0, %v1097
        %v1099 = vadd.s32 %v1094, 1
        %vm1100 = vcmp.gt.s32.totalorder %v1099, 0
        %v1101 = vsel %vm1100, %v1099, 0
        %v1102 = vshrl.u32 %v1101, 5
        %v1103 = vand.u32 %v1101, 31
        %v1104 = vsub.s32 32, %v1103
        %v1105 = vshrl.u32 683565275, %v1104
        %v1106 = vshll.u32 683565275, %v1103
        %v1107 = vshrl.u32 2475754826, %v1104
        %v1108 = vor.u32 %v1106, %v1107
        %v1109 = vshll.u32 2475754826, %v1103
        %v1110 = vshrl.u32 2131351028, %v1104
        %v1111 = vor.u32 %v1109, %v1110
        %v1112 = vshll.u32 2131351028, %v1103
        %v1113 = vshrl.u32 2102212464, %v1104
        %v1114 = vor.u32 %v1112, %v1113
        %v1115 = vshll.u32 2102212464, %v1103
        %v1116 = vshrl.u32 920167782, %v1104
        %v1117 = vor.u32 %v1115, %v1116
        %v1118 = vshll.u32 920167782, %v1103
        %v1119 = vshrl.u32 1326507024, %v1104
        %v1120 = vor.u32 %v1118, %v1119
        %vm1121 = vcmp.lt.s32.totalorder %v1102, 1
        %vm1122 = vcmp.lt.s32.totalorder %v1102, 2
        %vm1123 = vcmp.lt.s32.totalorder %v1102, 3
        %vm1124 = vcmp.lt.s32.totalorder %v1102, 4
        %v1125 = vsel %vm1121, %v1105, %v1108
        %v1126 = vsel %vm1124, %v1114, 2102212464
        %v1127 = vsel %vm1123, %v1111, %v1126
        %v1128 = vsel %vm1122, %v1125, %v1127
        %v1129 = vsel %vm1121, %v1108, %v1111
        %v1130 = vsel %vm1124, %v1117, 920167782
        %v1131 = vsel %vm1123, %v1114, %v1130
        %v1132 = vsel %vm1122, %v1129, %v1131
        %v1133 = vsel %vm1121, %v1111, %v1114
        %v1134 = vsel %vm1124, %v1120, 1326507024
        %v1135 = vsel %vm1123, %v1117, %v1134
        %v1136 = vsel %vm1122, %v1133, %v1135
        %v1137 = vshll.u32 %v1097, 8
        %v1138 = vmul.u32.u64.compose %v1137, %v1136
        %v1139 = vextract.low.u32 %v1138
        %v1140 = vextract.high.u32 %v1138
        %v1141 = vmul.u32.u64.compose %v1137, %v1132
        %v1142 = vextract.low.u32 %v1141
        %v1143 = vextract.high.u32 %v1141
        %v1144 = vmul.u32 %v1137, %v1128
        %v1145 = vadd.s32 %v1140, %v1142
        %vm1146 = vc.u32 %v1140, %v1142
        %v1147 = vadd.s32 %v1143, 1
        %v1148 = vsel %vm1146, %v1147, %v1143
        %v1149 = vadd.s32 %v1144, %v1148
        %v1150 = vadd.s32 %v1149, 536870912
        %v1151 = vshrl.u32 %v1150, 30
        %v1152 = vshll.u32 %v1151, 30
        %v1153 = vsub.s32 %v1149, %v1152
        %vm1154 = vcmp.lt.s32.totalorder %v1153, 0
        %v1155 = vsub.s32 0, %v1153
        %v1156 = vsel %vm1154, %v1155, %v1153
        %v1157 = vclz %v1156
        %v1158 = vsub.s32 %v1157, 2
        %vm1159 = vcmp.gt.s32.totalorder 0, %v1158
        %v1160 = vsel %vm1159, 0, %v1158
        %v1161 = vsub.s32 32, %v1160
        %v1162 = vshll.u32 %v1153, %v1160
        %v1163 = vshrl.u32 %v1145, %v1161
        %v1164 = vor.u32 %v1162, %v1163
        %v1165 = vsub.s32 4294967266, %v1160
        %v1166 = vadd.s32 %v1165, 127
        %v1167 = vshll.u32 %v1166, 23
        %v1168 = vor.u32 4788187, %v1167
        %v1169 = vand.u32 2147483647, %v1168
        %v1171 = vcvt.s32.f32 %v1164
        %v1172 = vmul.f32 %v1171, %v1169
        %v1173 = vxor.u32 %v1172, 2147483648
        %v1174 = vsel %vm1091, %v1173, %v1172
        %v1175 = vsub.s32 4, %v1151
        %v1176 = vsel %vm1091, %v1175, %v1151
        %v1177 = vsel %vm1090, %v465, %v1174
        %v1178 = vsel %vm1090, 0, %v1176
        %v1179 = vcosq.f32.pop %v1177
        %v1180 = vsinq.f32.pop %v1177
        %vm1181 = vweird.f32 %v465
        %v1182 = vand.u32 %v1178, 3
        %vm1183 = vcmp.lt.s32.totalorder %v1182, 2
        %vm1184 = vcmp.eq.s32.totalorder %v1182, 0
        %v1185 = vxor.u32 %v1180, 2147483648
        %v1186 = vsel %vm1184, %v1179, %v1185
        %vm1187 = vcmp.eq.s32.totalorder %v1182, 2
        %v1188 = vxor.u32 %v1179, 2147483648
        %v1189 = vsel %vm1187, %v1188, %v1180
        %v1190 = vsel %vm1183, %v1186, %v1189
        %v1191 = vsel %vm1181, nan, %v1190
        %v1192 = vand.u32 2147483647, %v466
        %vm1193 = vcmp.le.f32.partialorder %v1192, 0.7853982
        %vm1194 = vcmp.lt.s32.totalorder %v466, 0
        %v1195 = vand.u32 %v466, 2139095040
        %v1196 = vshrl.u32 %v1195, 23
        %v1197 = vsub.s32 %v1196, 127
        %v1198 = vand.u32 2147483647, %v466
        %v1199 = vand.u32 %v1198, 8388607
        %v1200 = vor.u32 %v1199, 8388608
        %v1201 = vsub.s32 0, %v1200
        %v1202 = vadd.s32 %v1197, 1
        %vm1203 = vcmp.gt.s32.totalorder %v1202, 0
        %v1204 = vsel %vm1203, %v1202, 0
        %v1205 = vshrl.u32 %v1204, 5
        %v1206 = vand.u32 %v1204, 31
        %v1207 = vsub.s32 32, %v1206
        %v1208 = vshrl.u32 683565275, %v1207
        %v1209 = vshll.u32 683565275, %v1206
        %v1210 = vshrl.u32 2475754826, %v1207
        %v1211 = vor.u32 %v1209, %v1210
        %v1212 = vshll.u32 2475754826, %v1206
        %v1213 = vshrl.u32 2131351028, %v1207
        %v1214 = vor.u32 %v1212, %v1213
        %v1215 = vshll.u32 2131351028, %v1206
        %v1216 = vshrl.u32 2102212464, %v1207
        %v1217 = vor.u32 %v1215, %v1216
        %v1218 = vshll.u32 2102212464, %v1206
        %v1219 = vshrl.u32 920167782, %v1207
        %v1220 = vor.u32 %v1218, %v1219
        %v1221 = vshll.u32 920167782, %v1206
        %v1222 = vshrl.u32 1326507024, %v1207
        %v1223 = vor.u32 %v1221, %v1222
        %vm1224 = vcmp.lt.s32.totalorder %v1205, 1
        %vm1225 = vcmp.lt.s32.totalorder %v1205, 2
        %vm1226 = vcmp.lt.s32.totalorder %v1205, 3
        %vm1227 = vcmp.lt.s32.totalorder %v1205, 4
        %v1228 = vsel %vm1224, %v1208, %v1211
        %v1229 = vsel %vm1227, %v1217, 2102212464
        %v1230 = vsel %vm1226, %v1214, %v1229
        %v1231 = vsel %vm1225, %v1228, %v1230
        %v1232 = vsel %vm1224, %v1211, %v1214
        %v1233 = vsel %vm1227, %v1220, 920167782
        %v1234 = vsel %vm1226, %v1217, %v1233
        %v1235 = vsel %vm1225, %v1232, %v1234
        %v1236 = vsel %vm1224, %v1214, %v1217
        %v1237 = vsel %vm1227, %v1223, 1326507024
        %v1238 = vsel %vm1226, %v1220, %v1237
        %v1239 = vsel %vm1225, %v1236, %v1238
        %v1240 = vshll.u32 %v1200, 8
        %v1241 = vmul.u32.u64.compose %v1240, %v1239
        %v1242 = vextract.low.u32 %v1241
        %v1243 = vextract.high.u32 %v1241
        %v1244 = vmul.u32.u64.compose %v1240, %v1235
        %v1245 = vextract.low.u32 %v1244
        %v1246 = vextract.high.u32 %v1244
        %v1247 = vmul.u32 %v1240, %v1231
        %v1248 = vadd.s32 %v1243, %v1245
        %vm1249 = vc.u32 %v1243, %v1245
        %v1250 = vadd.s32 %v1246, 1
        %v1251 = vsel %vm1249, %v1250, %v1246
        %v1252 = vadd.s32 %v1247, %v1251
        %v1253 = vadd.s32 %v1252, 536870912
        %v1254 = vshrl.u32 %v1253, 30
        %v1255 = vshll.u32 %v1254, 30
        %v1256 = vsub.s32 %v1252, %v1255
        %vm1257 = vcmp.lt.s32.totalorder %v1256, 0
        %v1258 = vsub.s32 0, %v1256
        %v1259 = vsel %vm1257, %v1258, %v1256
        %v1260 = vclz %v1259
        %v1261 = vsub.s32 %v1260, 2
        %vm1262 = vcmp.gt.s32.totalorder 0, %v1261
        %v1263 = vsel %vm1262, 0, %v1261
        %v1264 = vsub.s32 32, %v1263
        %v1265 = vshll.u32 %v1256, %v1263
        %v1266 = vshrl.u32 %v1248, %v1264
        %v1267 = vor.u32 %v1265, %v1266
        %v1268 = vsub.s32 4294967266, %v1263
        %v1269 = vadd.s32 %v1268, 127
        %v1270 = vshll.u32 %v1269, 23
        %v1271 = vor.u32 4788187, %v1270
        %v1272 = vand.u32 2147483647, %v1271
        %v1274 = vcvt.s32.f32 %v1267
        %v1275 = vmul.f32 %v1274, %v1272
        %v1276 = vxor.u32 %v1275, 2147483648
        %v1277 = vsel %vm1194, %v1276, %v1275
        %v1278 = vsub.s32 4, %v1254
        %v1279 = vsel %vm1194, %v1278, %v1254
        %v1280 = vsel %vm1193, %v466, %v1277
        %v1281 = vsel %vm1193, 0, %v1279
        %v1282 = vcosq.f32.pop %v1280
        %v1283 = vsinq.f32.pop %v1280
        %vm1284 = vweird.f32 %v466
        %v1285 = vand.u32 %v1281, 3
        %vm1286 = vcmp.lt.s32.totalorder %v1285, 2
        %vm1287 = vcmp.eq.s32.totalorder %v1285, 0
        %v1288 = vxor.u32 %v1283, 2147483648
        %v1289 = vsel %vm1287, %v1282, %v1288
        %vm1290 = vcmp.eq.s32.totalorder %v1285, 2
        %v1291 = vxor.u32 %v1282, 2147483648
        %v1292 = vsel %vm1290, %v1291, %v1283
        %v1293 = vsel %vm1286, %v1289, %v1292
        %v1294 = vsel %vm1284, nan, %v1293
        %vm1295 = vcmask 48128
        %v1297 = vsel %vm1295, %v396, 0
        %v1300 = vsel %vm1295, %v397, 0
        %v1303 = vsel %vm1295, %v398, 0
        %v1306 = vsel %vm1295, %v399, 0
        %vm1308 = vcmask 1045504
        %v1310 = vsel %vm1308, %v985, 0
        %v1313 = vsel %vm1308, %v1088, 0
        %v1316 = vsel %vm1308, %v1191, 0
        %v1319 = vsel %vm1308, %v1294, 0
        %1321 = vmatprep.subr.mxu0 %v1313
        %1322 = vmatpush1.msra.mxu0 %v1310
        %1323 = vmatprep.subr.mxu0 0.0
        %1324 = vmatpush1.msra.mxu0 0.0
        %1325 = vmatprep.subr.mxu0 0.0
        %1326 = vmatpush1.msra.mxu0 0.0
        %1327 = vmatprep.subr.mxu0 0.0
        %1328 = vmatpush1.msra.mxu0 0.0
        %1329 = vmatprep.subr.mxu0 0.0
        %1330 = vmatpush1.msra.mxu0 0.0
        %1331 = vmatprep.subr.mxu0 0.0
        %1332 = vmatpush1.msra.mxu0 0.0
        %1333 = vmatprep.subr.mxu0 0.0
        %1334 = vmatpush1.msra.mxu0 0.0
        %1335 = vmatprep.subr.mxu0 0.0
        %1336 = vmatpush1.msra.mxu0 0.0
        %1337 = vmatprep.subr.mxu0 0.0
        %1338 = vmatpush1.msra.mxu0 0.0
        %1339 = vmatprep.subr.mxu0 0.0
        %1340 = vmatpush1.msra.mxu0 0.0
        %1341 = vmatprep.subr.mxu0 0.0
        %1342 = vmatpush1.msra.mxu0 0.0
        %1343 = vmatprep.subr.mxu0 0.0
        %1344 = vmatpush1.msra.mxu0 0.0
        %1345 = vmatprep.subr.mxu0 0.0
        %1346 = vmatpush1.msra.mxu0 0.0
        %1347 = vmatprep.subr.mxu0 0.0
        %1348 = vmatpush1.msra.mxu0 0.0
        %1349 = vmatprep.subr.mxu0 0.0
        %1350 = vmatpush1.msra.mxu0 0.0
        %1351 = vmatprep.subr.mxu0 0.0
        %1352 = vmatpush1.msra.mxu0 0.0
        %1353 = vmatprep.subr.mxu0 0.0
        %1354 = vmatpush1.msra.mxu0 0.0
        %1355 = vmatprep.subr.mxu0 0.0
        %1356 = vmatpush1.msra.mxu0 0.0
        %1357 = vmatprep.subr.mxu0 0.0
        %1358 = vmatpush1.msra.mxu0 0.0
        %1359 = vmatprep.subr.mxu0 0.0
        %1360 = vmatpush1.msra.mxu0 0.0
        %1361 = vmatprep.subr.mxu0 0.0
        %1362 = vmatpush1.msra.mxu0 0.0
        %1363 = vmatprep.subr.mxu0 0.0
        %1364 = vmatpush1.msra.mxu0 0.0
        %1365 = vmatprep.subr.mxu0 0.0
        %1366 = vmatpush1.msra.mxu0 0.0
        %1367 = vmatprep.subr.mxu0 0.0
        %1368 = vmatpush1.msra.mxu0 0.0
        %1369 = vmatprep.subr.mxu0 0.0
        %1370 = vmatpush1.msra.mxu0 0.0
        %1371 = vmatprep.subr.mxu0 0.0
        %1372 = vmatpush1.msra.mxu0 0.0
        %1373 = vmatprep.subr.mxu0 0.0
        %1374 = vmatpush1.msra.mxu0 0.0
        %1375 = vmatprep.subr.mxu0 0.0
        %1376 = vmatpush1.msra.mxu0 0.0
        %1377 = vmatprep.subr.mxu0 0.0
        %1378 = vmatpush1.msra.mxu0 0.0
        %1379 = vmatprep.subr.mxu0 0.0
        %1380 = vmatpush1.msra.mxu0 0.0
        %1381 = vmatprep.subr.mxu0 0.0
        %1382 = vmatpush1.msra.mxu0 0.0
        %1383 = vmatprep.subr.mxu0 0.0
        %1384 = vmatpush1.msra.mxu0 0.0
        %1385 = vmatprep.mubr.f32.mxu0 0.0
        %1386 = vmatmul.mubr.f32.gmra.mrb[0].mxu0 %v1297
        %v1387 = vpop.f32.mrb[0].mxu0
        %v1388 = vadd.f32 0.0, %v1387
        %v1389 = vpop.f32.mrb[0].mxu0
        %v1390 = vadd.f32 0.0, %v1389
        %1391 = vmatprep.mubr.f32.mxu0 0.0
        %1392 = vmatmul.mubr.f32.gmra.mrb[0].mxu0 %v1300
        %v1393 = vpop.f32.mrb[0].mxu0
        %v1394 = vadd.f32 0.0, %v1393
        %v1395 = vpop.f32.mrb[0].mxu0
        %v1396 = vadd.f32 0.0, %v1395
        %1397 = vmatprep.mubr.f32.mxu0 0.0
        %1398 = vmatmul.mubr.f32.gmra.mrb[0].mxu0 %v1303
        %v1399 = vpop.f32.mrb[0].mxu0
        %v1400 = vadd.f32 0.0, %v1399
        %v1401 = vpop.f32.mrb[0].mxu0
        %v1402 = vadd.f32 0.0, %v1401
        %1403 = vmatprep.mubr.f32.mxu0 0.0
        %1404 = vmatmul.mubr.f32.gmra.mrb[0].mxu0 %v1306
        %v1405 = vpop.f32.mrb[0].mxu0
        %v1406 = vadd.f32 0.0, %v1405
        %v1407 = vpop.f32.mrb[0].mxu0
        %v1408 = vadd.f32 0.0, %v1407
        %1409 = vdwg.mxu0
        %1410 = vmatprep.subr.mxu0 %v1319
        %1411 = vmatpush1.msra.mxu0 %v1316
        %1412 = vmatprep.subr.mxu0 0.0
        %1413 = vmatpush1.msra.mxu0 0.0
        %1414 = vmatprep.subr.mxu0 0.0
        %1415 = vmatpush1.msra.mxu0 0.0
        %1416 = vmatprep.subr.mxu0 0.0
        %1417 = vmatpush1.msra.mxu0 0.0
        %1418 = vmatprep.subr.mxu0 0.0
        %1419 = vmatpush1.msra.mxu0 0.0
        %1420 = vmatprep.subr.mxu0 0.0
        %1421 = vmatpush1.msra.mxu0 0.0
        %1422 = vmatprep.subr.mxu0 0.0
        %1423 = vmatpush1.msra.mxu0 0.0
        %1424 = vmatprep.subr.mxu0 0.0
        %1425 = vmatpush1.msra.mxu0 0.0
        %1426 = vmatprep.subr.mxu0 0.0
        %1427 = vmatpush1.msra.mxu0 0.0
        %1428 = vmatprep.subr.mxu0 0.0
        %1429 = vmatpush1.msra.mxu0 0.0
        %1430 = vmatprep.subr.mxu0 0.0
        %1431 = vmatpush1.msra.mxu0 0.0
        %1432 = vmatprep.subr.mxu0 0.0
        %1433 = vmatpush1.msra.mxu0 0.0
        %1434 = vmatprep.subr.mxu0 0.0
        %1435 = vmatpush1.msra.mxu0 0.0
        %1436 = vmatprep.subr.mxu0 0.0
        %1437 = vmatpush1.msra.mxu0 0.0
        %1438 = vmatprep.subr.mxu0 0.0
        %1439 = vmatpush1.msra.mxu0 0.0
        %1440 = vmatprep.subr.mxu0 0.0
        %1441 = vmatpush1.msra.mxu0 0.0
        %1442 = vmatprep.subr.mxu0 0.0
        %1443 = vmatpush1.msra.mxu0 0.0
        %1444 = vmatprep.subr.mxu0 0.0
        %1445 = vmatpush1.msra.mxu0 0.0
        %1446 = vmatprep.subr.mxu0 0.0
        %1447 = vmatpush1.msra.mxu0 0.0
        %1448 = vmatprep.subr.mxu0 0.0
        %1449 = vmatpush1.msra.mxu0 0.0
        %1450 = vmatprep.subr.mxu0 0.0
        %1451 = vmatpush1.msra.mxu0 0.0
        %1452 = vmatprep.subr.mxu0 0.0
        %1453 = vmatpush1.msra.mxu0 0.0
        %1454 = vmatprep.subr.mxu0 0.0
        %1455 = vmatpush1.msra.mxu0 0.0
        %1456 = vmatprep.subr.mxu0 0.0
        %1457 = vmatpush1.msra.mxu0 0.0
        %1458 = vmatprep.subr.mxu0 0.0
        %1459 = vmatpush1.msra.mxu0 0.0
        %1460 = vmatprep.subr.mxu0 0.0
        %1461 = vmatpush1.msra.mxu0 0.0
        %1462 = vmatprep.subr.mxu0 0.0
        %1463 = vmatpush1.msra.mxu0 0.0
        %1464 = vmatprep.subr.mxu0 0.0
        %1465 = vmatpush1.msra.mxu0 0.0
        %1466 = vmatprep.subr.mxu0 0.0
        %1467 = vmatpush1.msra.mxu0 0.0
        %1468 = vmatprep.subr.mxu0 0.0
        %1469 = vmatpush1.msra.mxu0 0.0
        %1470 = vmatprep.subr.mxu0 0.0
        %1471 = vmatpush1.msra.mxu0 0.0
        %1472 = vmatprep.subr.mxu0 0.0
        %1473 = vmatpush1.msra.mxu0 0.0
        %1474 = vmatprep.mubr.f32.mxu0 0.0
        %1475 = vmatmul.mubr.f32.gmra.mrb[0].mxu0 %v1297
        %v1476 = vpop.f32.mrb[0].mxu0
        %v1477 = vadd.f32 0.0, %v1476
        %v1478 = vpop.f32.mrb[0].mxu0
        %v1479 = vadd.f32 0.0, %v1478
        %1480 = vmatprep.mubr.f32.mxu0 0.0
        %1481 = vmatmul.mubr.f32.gmra.mrb[0].mxu0 %v1300
        %v1482 = vpop.f32.mrb[0].mxu0
        %v1483 = vadd.f32 0.0, %v1482
        %v1484 = vpop.f32.mrb[0].mxu0
        %v1485 = vadd.f32 0.0, %v1484
        %1486 = vmatprep.mubr.f32.mxu0 0.0
        %1487 = vmatmul.mubr.f32.gmra.mrb[0].mxu0 %v1303
        %v1488 = vpop.f32.mrb[0].mxu0
        %v1489 = vadd.f32 0.0, %v1488
        %v1490 = vpop.f32.mrb[0].mxu0
        %v1491 = vadd.f32 0.0, %v1490
        %1492 = vmatprep.mubr.f32.mxu0 0.0
        %1493 = vmatmul.mubr.f32.gmra.mrb[0].mxu0 %v1306
        %v1494 = vpop.f32.mrb[0].mxu0
        %v1495 = vadd.f32 0.0, %v1494
        %v1496 = vpop.f32.mrb[0].mxu0
        %v1497 = vadd.f32 0.0, %v1496
        %1498 = vdwg.mxu0
        %v1500 = vsel %vm1295, %v392, 0
        %v1503 = vsel %vm1295, %v393, 0
        %v1506 = vsel %vm1295, %v394, 0
        %v1509 = vsel %vm1295, %v395, 0
        %v1512 = vsel %vm1308, %v570, 0
        %v1515 = vsel %vm1308, %v674, 0
        %v1518 = vsel %vm1308, %v778, 0
        %v1521 = vsel %vm1308, %v882, 0
        %1523 = vmatprep.subr.mxu0 %v1515
        %1524 = vmatpush1.msra.mxu0 %v1512
        %1525 = vmatprep.subr.mxu0 0.0
        %1526 = vmatpush1.msra.mxu0 0.0
        %1527 = vmatprep.subr.mxu0 0.0
        %1528 = vmatpush1.msra.mxu0 0.0
        %1529 = vmatprep.subr.mxu0 0.0
        %1530 = vmatpush1.msra.mxu0 0.0
        %1531 = vmatprep.subr.mxu0 0.0
        %1532 = vmatpush1.msra.mxu0 0.0
        %1533 = vmatprep.subr.mxu0 0.0
        %1534 = vmatpush1.msra.mxu0 0.0
        %1535 = vmatprep.subr.mxu0 0.0
        %1536 = vmatpush1.msra.mxu0 0.0
        %1537 = vmatprep.subr.mxu0 0.0
        %1538 = vmatpush1.msra.mxu0 0.0
        %1539 = vmatprep.subr.mxu0 0.0
        %1540 = vmatpush1.msra.mxu0 0.0
        %1541 = vmatprep.subr.mxu0 0.0
        %1542 = vmatpush1.msra.mxu0 0.0
        %1543 = vmatprep.subr.mxu0 0.0
        %1544 = vmatpush1.msra.mxu0 0.0
        %1545 = vmatprep.subr.mxu0 0.0
        %1546 = vmatpush1.msra.mxu0 0.0
        %1547 = vmatprep.subr.mxu0 0.0
        %1548 = vmatpush1.msra.mxu0 0.0
        %1549 = vmatprep.subr.mxu0 0.0
        %1550 = vmatpush1.msra.mxu0 0.0
        %1551 = vmatprep.subr.mxu0 0.0
        %1552 = vmatpush1.msra.mxu0 0.0
        %1553 = vmatprep.subr.mxu0 0.0
        %1554 = vmatpush1.msra.mxu0 0.0
        %1555 = vmatprep.subr.mxu0 0.0
        %1556 = vmatpush1.msra.mxu0 0.0
        %1557 = vmatprep.subr.mxu0 0.0
        %1558 = vmatpush1.msra.mxu0 0.0
        %1559 = vmatprep.subr.mxu0 0.0
        %1560 = vmatpush1.msra.mxu0 0.0
        %1561 = vmatprep.subr.mxu0 0.0
        %1562 = vmatpush1.msra.mxu0 0.0
        %1563 = vmatprep.subr.mxu0 0.0
        %1564 = vmatpush1.msra.mxu0 0.0
        %1565 = vmatprep.subr.mxu0 0.0
        %1566 = vmatpush1.msra.mxu0 0.0
        %1567 = vmatprep.subr.mxu0 0.0
        %1568 = vmatpush1.msra.mxu0 0.0
        %1569 = vmatprep.subr.mxu0 0.0
        %1570 = vmatpush1.msra.mxu0 0.0
        %1571 = vmatprep.subr.mxu0 0.0
        %1572 = vmatpush1.msra.mxu0 0.0
        %1573 = vmatprep.subr.mxu0 0.0
        %1574 = vmatpush1.msra.mxu0 0.0
        %1575 = vmatprep.subr.mxu0 0.0
        %1576 = vmatpush1.msra.mxu0 0.0
        %1577 = vmatprep.subr.mxu0 0.0
        %1578 = vmatpush1.msra.mxu0 0.0
        %1579 = vmatprep.subr.mxu0 0.0
        %1580 = vmatpush1.msra.mxu0 0.0
        %1581 = vmatprep.subr.mxu0 0.0
        %1582 = vmatpush1.msra.mxu0 0.0
        %1583 = vmatprep.subr.mxu0 0.0
        %1584 = vmatpush1.msra.mxu0 0.0
        %1585 = vmatprep.subr.mxu0 0.0
        %1586 = vmatpush1.msra.mxu0 0.0
        %1587 = vmatprep.mubr.f32.mxu0 0.0
        %1588 = vmatmul.mubr.f32.gmra.mrb[0].mxu0 %v1500
        %v1589 = vpop.f32.mrb[0].mxu0
        %v1590 = vadd.f32 %v1388, %v1589
        %v1591 = vpop.f32.mrb[0].mxu0
        %v1592 = vadd.f32 %v1390, %v1591
        %1593 = vmatprep.mubr.f32.mxu0 0.0
        %1594 = vmatmul.mubr.f32.gmra.mrb[0].mxu0 %v1503
        %v1595 = vpop.f32.mrb[0].mxu0
        %v1596 = vadd.f32 %v1394, %v1595
        %v1597 = vpop.f32.mrb[0].mxu0
        %v1598 = vadd.f32 %v1396, %v1597
        %1599 = vmatprep.mubr.f32.mxu0 0.0
        %1600 = vmatmul.mubr.f32.gmra.mrb[0].mxu0 %v1506
        %v1601 = vpop.f32.mrb[0].mxu0
        %v1602 = vadd.f32 %v1400, %v1601
        %v1603 = vpop.f32.mrb[0].mxu0
        %v1604 = vadd.f32 %v1402, %v1603
        %1605 = vmatprep.mubr.f32.mxu0 0.0
        %1606 = vmatmul.mubr.f32.gmra.mrb[0].mxu0 %v1509
        %v1607 = vpop.f32.mrb[0].mxu0
        %v1608 = vadd.f32 %v1406, %v1607
        %v1609 = vpop.f32.mrb[0].mxu0
        %v1610 = vadd.f32 %v1408, %v1609
        %1611 = vdwg.mxu0
        %1612 = vmatprep.subr.mxu0 %v1521
        %1613 = vmatpush1.msra.mxu0 %v1518
        %1614 = vmatprep.subr.mxu0 0.0
        %1615 = vmatpush1.msra.mxu0 0.0
        %1616 = vmatprep.subr.mxu0 0.0
        %1617 = vmatpush1.msra.mxu0 0.0
        %1618 = vmatprep.subr.mxu0 0.0
        %1619 = vmatpush1.msra.mxu0 0.0
        %1620 = vmatprep.subr.mxu0 0.0
        %1621 = vmatpush1.msra.mxu0 0.0
        %1622 = vmatprep.subr.mxu0 0.0
        %1623 = vmatpush1.msra.mxu0 0.0
        %1624 = vmatprep.subr.mxu0 0.0
        %1625 = vmatpush1.msra.mxu0 0.0
        %1626 = vmatprep.subr.mxu0 0.0
        %1627 = vmatpush1.msra.mxu0 0.0
        %1628 = vmatprep.subr.mxu0 0.0
        %1629 = vmatpush1.msra.mxu0 0.0
        %1630 = vmatprep.subr.mxu0 0.0
        %1631 = vmatpush1.msra.mxu0 0.0
        %1632 = vmatprep.subr.mxu0 0.0
        %1633 = vmatpush1.msra.mxu0 0.0
        %1634 = vmatprep.subr.mxu0 0.0
        %1635 = vmatpush1.msra.mxu0 0.0
        %1636 = vmatprep.subr.mxu0 0.0
        %1637 = vmatpush1.msra.mxu0 0.0
        %1638 = vmatprep.subr.mxu0 0.0
        %1639 = vmatpush1.msra.mxu0 0.0
        %1640 = vmatprep.subr.mxu0 0.0
        %1641 = vmatpush1.msra.mxu0 0.0
        %1642 = vmatprep.subr.mxu0 0.0
        %1643 = vmatpush1.msra.mxu0 0.0
        %1644 = vmatprep.subr.mxu0 0.0
        %1645 = vmatpush1.msra.mxu0 0.0
        %1646 = vmatprep.subr.mxu0 0.0
        %1647 = vmatpush1.msra.mxu0 0.0
        %1648 = vmatprep.subr.mxu0 0.0
        %1649 = vmatpush1.msra.mxu0 0.0
        %1650 = vmatprep.subr.mxu0 0.0
        %1651 = vmatpush1.msra.mxu0 0.0
        %1652 = vmatprep.subr.mxu0 0.0
        %1653 = vmatpush1.msra.mxu0 0.0
        %1654 = vmatprep.subr.mxu0 0.0
        %1655 = vmatpush1.msra.mxu0 0.0
        %1656 = vmatprep.subr.mxu0 0.0
        %1657 = vmatpush1.msra.mxu0 0.0
        %1658 = vmatprep.subr.mxu0 0.0
        %1659 = vmatpush1.msra.mxu0 0.0
        %1660 = vmatprep.subr.mxu0 0.0
        %1661 = vmatpush1.msra.mxu0 0.0
        %1662 = vmatprep.subr.mxu0 0.0
        %1663 = vmatpush1.msra.mxu0 0.0
        %1664 = vmatprep.subr.mxu0 0.0
        %1665 = vmatpush1.msra.mxu0 0.0
        %1666 = vmatprep.subr.mxu0 0.0
        %1667 = vmatpush1.msra.mxu0 0.0
        %1668 = vmatprep.subr.mxu0 0.0
        %1669 = vmatpush1.msra.mxu0 0.0
        %1670 = vmatprep.subr.mxu0 0.0
        %1671 = vmatpush1.msra.mxu0 0.0
        %1672 = vmatprep.subr.mxu0 0.0
        %1673 = vmatpush1.msra.mxu0 0.0
        %1674 = vmatprep.subr.mxu0 0.0
        %1675 = vmatpush1.msra.mxu0 0.0
        %1676 = vmatprep.mubr.f32.mxu0 0.0
        %1677 = vmatmul.mubr.f32.gmra.mrb[0].mxu0 %v1500
        %v1678 = vpop.f32.mrb[0].mxu0
        %v1679 = vadd.f32 %v1477, %v1678
        %v1680 = vpop.f32.mrb[0].mxu0
        %v1681 = vadd.f32 %v1479, %v1680
        %1682 = vmatprep.mubr.f32.mxu0 0.0
        %1683 = vmatmul.mubr.f32.gmra.mrb[0].mxu0 %v1503
        %v1684 = vpop.f32.mrb[0].mxu0
        %v1685 = vadd.f32 %v1483, %v1684
        %v1686 = vpop.f32.mrb[0].mxu0
        %v1687 = vadd.f32 %v1485, %v1686
        %1688 = vmatprep.mubr.f32.mxu0 0.0
        %1689 = vmatmul.mubr.f32.gmra.mrb[0].mxu0 %v1506
        %v1690 = vpop.f32.mrb[0].mxu0
        %v1691 = vadd.f32 %v1489, %v1690
        %v1692 = vpop.f32.mrb[0].mxu0
        %v1693 = vadd.f32 %v1491, %v1692
        %1694 = vmatprep.mubr.f32.mxu0 0.0
        %1695 = vmatmul.mubr.f32.gmra.mrb[0].mxu0 %v1509
        %v1696 = vpop.f32.mrb[0].mxu0
        %v1697 = vadd.f32 %v1495, %v1696
        %v1698 = vpop.f32.mrb[0].mxu0
        %v1699 = vadd.f32 %v1497, %v1698
        %1700 = vdwg.mxu0
        %1702 = vset.pattern.permute.xlu0 0
        %1703 = vperm.xlu0 %1702, %v400
        %v1704 = vpop.permute.xlu0 %1703
        %1707 = vset.pattern.permute.xlu0 0
        %1708 = vperm.xlu0 %1707, %v401
        %v1709 = vpop.permute.xlu0 %1708
        %1712 = vset.pattern.permute.xlu0 0
        %1713 = vperm.xlu0 %1712, %v402
        %v1714 = vpop.permute.xlu0 %1713
        %1717 = vset.pattern.permute.xlu0 0
        %1718 = vperm.xlu0 %1717, %v403
        %v1719 = vpop.permute.xlu0 %1718
        %v1721 = vadd.f32 %v1590, %v1704
        %v1722 = vadd.f32 %v1592, %v1704
        %v1723 = vadd.f32 %v1679, %v1704
        %v1724 = vadd.f32 %v1681, %v1704
        %v1725 = vadd.f32 %v1596, %v1709
        %v1726 = vadd.f32 %v1598, %v1709
        %v1727 = vadd.f32 %v1685, %v1709
        %v1728 = vadd.f32 %v1687, %v1709
        %v1729 = vadd.f32 %v1602, %v1714
        %v1730 = vadd.f32 %v1604, %v1714
        %v1731 = vadd.f32 %v1691, %v1714
        %v1732 = vadd.f32 %v1693, %v1714
        %v1733 = vadd.f32 %v1608, %v1719
        %v1734 = vadd.f32 %v1610, %v1719
        %v1735 = vadd.f32 %v1697, %v1719
        %v1736 = vadd.f32 %v1699, %v1719
        %v1737 = vxor.u32 %v1721, 2147483648
        %v1738 = vxor.u32 %v1722, 2147483648
        %v1739 = vxor.u32 %v1723, 2147483648
        %v1740 = vxor.u32 %v1724, 2147483648
        %v1741 = vxor.u32 %v1725, 2147483648
        %v1742 = vxor.u32 %v1726, 2147483648
        %v1743 = vxor.u32 %v1727, 2147483648
        %v1744 = vxor.u32 %v1728, 2147483648
        %v1745 = vxor.u32 %v1729, 2147483648
        %v1746 = vxor.u32 %v1730, 2147483648
        %v1747 = vxor.u32 %v1731, 2147483648
        %v1748 = vxor.u32 %v1732, 2147483648
        %v1749 = vxor.u32 %v1733, 2147483648
        %v1750 = vxor.u32 %v1734, 2147483648
        %v1751 = vxor.u32 %v1735, 2147483648
        %v1752 = vxor.u32 %v1736, 2147483648
        %v1753 = vmul.f32 %v1737, 1.442695
        %v1754 = vpow.pop %v1753
        %v1755 = vmul.f32 %v1738, 1.442695
        %v1756 = vpow.pop %v1755
        %v1757 = vmul.f32 %v1739, 1.442695
        %v1758 = vpow.pop %v1757
        %v1759 = vmul.f32 %v1740, 1.442695
        %v1760 = vpow.pop %v1759
        %v1761 = vmul.f32 %v1741, 1.442695
        %v1762 = vpow.pop %v1761
        %v1763 = vmul.f32 %v1742, 1.442695
        %v1764 = vpow.pop %v1763
        %v1765 = vmul.f32 %v1743, 1.442695
        %v1766 = vpow.pop %v1765
        %v1767 = vmul.f32 %v1744, 1.442695
        %v1768 = vpow.pop %v1767
        %v1769 = vmul.f32 %v1745, 1.442695
        %v1770 = vpow.pop %v1769
        %v1771 = vmul.f32 %v1746, 1.442695
        %v1772 = vpow.pop %v1771
        %v1773 = vmul.f32 %v1747, 1.442695
        %v1774 = vpow.pop %v1773
        %v1775 = vmul.f32 %v1748, 1.442695
        %v1776 = vpow.pop %v1775
        %v1777 = vmul.f32 %v1749, 1.442695
        %v1778 = vpow.pop %v1777
        %v1779 = vmul.f32 %v1750, 1.442695
        %v1780 = vpow.pop %v1779
        %v1781 = vmul.f32 %v1751, 1.442695
        %v1782 = vpow.pop %v1781
        %v1783 = vmul.f32 %v1752, 1.442695
        %v1784 = vpow.pop %v1783
        %v1785 = vadd.f32 %v1754, 1.0
        %v1786 = vadd.f32 %v1756, 1.0
        %v1787 = vadd.f32 %v1758, 1.0
        %v1788 = vadd.f32 %v1760, 1.0
        %v1789 = vadd.f32 %v1762, 1.0
        %v1790 = vadd.f32 %v1764, 1.0
        %v1791 = vadd.f32 %v1766, 1.0
        %v1792 = vadd.f32 %v1768, 1.0
        %v1793 = vadd.f32 %v1770, 1.0
        %v1794 = vadd.f32 %v1772, 1.0
        %v1795 = vadd.f32 %v1774, 1.0
        %v1796 = vadd.f32 %v1776, 1.0
        %v1797 = vadd.f32 %v1778, 1.0
        %v1798 = vadd.f32 %v1780, 1.0
        %v1799 = vadd.f32 %v1782, 1.0
        %v1800 = vadd.f32 %v1784, 1.0
        %v1801 = vrcp.pop %v1785
        %v1802 = vmul.f32 1.0, %v1801
        %v1803 = vrcp.pop %v1786
        %v1804 = vmul.f32 1.0, %v1803
        %v1805 = vrcp.pop %v1787
        %v1806 = vmul.f32 1.0, %v1805
        %v1807 = vrcp.pop %v1788
        %v1808 = vmul.f32 1.0, %v1807
        %v1809 = vrcp.pop %v1789
        %v1810 = vmul.f32 1.0, %v1809
        %v1811 = vrcp.pop %v1790
        %v1812 = vmul.f32 1.0, %v1811
        %v1813 = vrcp.pop %v1791
        %v1814 = vmul.f32 1.0, %v1813
        %v1815 = vrcp.pop %v1792
        %v1816 = vmul.f32 1.0, %v1815
        %v1817 = vrcp.pop %v1793
        %v1818 = vmul.f32 1.0, %v1817
        %v1819 = vrcp.pop %v1794
        %v1820 = vmul.f32 1.0, %v1819
        %v1821 = vrcp.pop %v1795
        %v1822 = vmul.f32 1.0, %v1821
        %v1823 = vrcp.pop %v1796
        %v1824 = vmul.f32 1.0, %v1823
        %v1825 = vrcp.pop %v1797
        %v1826 = vmul.f32 1.0, %v1825
        %v1827 = vrcp.pop %v1798
        %v1828 = vmul.f32 1.0, %v1827
        %v1829 = vrcp.pop %v1799
        %v1830 = vmul.f32 1.0, %v1829
        %v1831 = vrcp.pop %v1800
        %v1832 = vmul.f32 1.0, %v1831
        %v1833 = vmul.f32 %v1721, %v1802
        %v1834 = vmul.f32 %v1722, %v1804
        %v1835 = vmul.f32 %v1723, %v1806
        %v1836 = vmul.f32 %v1724, %v1808
        %v1837 = vmul.f32 %v1725, %v1810
        %v1838 = vmul.f32 %v1726, %v1812
        %v1839 = vmul.f32 %v1727, %v1814
        %v1840 = vmul.f32 %v1728, %v1816
        %v1841 = vmul.f32 %v1729, %v1818
        %v1842 = vmul.f32 %v1730, %v1820
        %v1843 = vmul.f32 %v1731, %v1822
        %v1844 = vmul.f32 %v1732, %v1824
        %v1845 = vmul.f32 %v1733, %v1826
        %v1846 = vmul.f32 %v1734, %v1828
        %v1847 = vmul.f32 %v1735, %v1830
        %v1848 = vmul.f32 %v1736, %v1832
        %v1849 = vld [vmem:[%s5] sm:$0xff]
        %v1850 = vld [vmem:[%s5 + $0x8] sm:$0xff]
        %v1851 = vld [vmem:[%s5 + $0x10] sm:$0xff]
        %v1852 = vld [vmem:[%s5 + $0x18] sm:$0xff]
        %v1853 = vld [vmem:[%s6] sm:$0xff]
        %v1854 = vld [vmem:[%s6 + $0x8] sm:$0xff]
        %v1855 = vld [vmem:[%s6 + $0x10] sm:$0xff]
        %v1856 = vld [vmem:[%s6 + $0x18] sm:$0xff]
        %1858 = vset.pattern.permute.xlu0 0
        %1859 = vperm.xlu0 %1858, %v1853
        %v1860 = vpop.permute.xlu0 %1859
        %1863 = vset.pattern.permute.xlu0 0
        %1864 = vperm.xlu0 %1863, %v1854
        %v1865 = vpop.permute.xlu0 %1864
        %1868 = vset.pattern.permute.xlu0 0
        %1869 = vperm.xlu0 %1868, %v1855
        %v1870 = vpop.permute.xlu0 %1869
        %1873 = vset.pattern.permute.xlu0 0
        %1874 = vperm.xlu0 %1873, %v1856
        %v1875 = vpop.permute.xlu0 %1874
        %vm1877 = vcmask 261120
        %v1879 = vsel %vm1877, %v1849, 0
        %v1882 = vsel %vm1877, %v1850, 0
        %v1885 = vsel %vm1877, %v1851, 0
        %v1888 = vsel %vm1877, %v1852, 0
        %1890 = vmatprep.subr.mxu0 %v1834
        %1891 = vmatpush1.msra.mxu0 %v1833
        %1892 = vmatprep.subr.mxu0 %v1838
        %1893 = vmatpush1.msra.mxu0 %v1837
        %1894 = vmatprep.subr.mxu0 %v1842
        %1895 = vmatpush1.msra.mxu0 %v1841
        %1896 = vmatprep.subr.mxu0 %v1846
        %1897 = vmatpush1.msra.mxu0 %v1845
        %1898 = vmatprep.subr.mxu0 0.0
        %1899 = vmatpush1.msra.mxu0 0.0
        %1900 = vmatprep.subr.mxu0 0.0
        %1901 = vmatpush1.msra.mxu0 0.0
        %1902 = vmatprep.subr.mxu0 0.0
        %1903 = vmatpush1.msra.mxu0 0.0
        %1904 = vmatprep.subr.mxu0 0.0
        %1905 = vmatpush1.msra.mxu0 0.0
        %1906 = vmatprep.subr.mxu0 0.0
        %1907 = vmatpush1.msra.mxu0 0.0
        %1908 = vmatprep.subr.mxu0 0.0
        %1909 = vmatpush1.msra.mxu0 0.0
        %1910 = vmatprep.subr.mxu0 0.0
        %1911 = vmatpush1.msra.mxu0 0.0
        %1912 = vmatprep.subr.mxu0 0.0
        %1913 = vmatpush1.msra.mxu0 0.0
        %1914 = vmatprep.subr.mxu0 0.0
        %1915 = vmatpush1.msra.mxu0 0.0
        %1916 = vmatprep.subr.mxu0 0.0
        %1917 = vmatpush1.msra.mxu0 0.0
        %1918 = vmatprep.subr.mxu0 0.0
        %1919 = vmatpush1.msra.mxu0 0.0
        %1920 = vmatprep.subr.mxu0 0.0
        %1921 = vmatpush1.msra.mxu0 0.0
        %1922 = vmatprep.subr.mxu0 0.0
        %1923 = vmatpush1.msra.mxu0 0.0
        %1924 = vmatprep.subr.mxu0 0.0
        %1925 = vmatpush1.msra.mxu0 0.0
        %1926 = vmatprep.subr.mxu0 0.0
        %1927 = vmatpush1.msra.mxu0 0.0
        %1928 = vmatprep.subr.mxu0 0.0
        %1929 = vmatpush1.msra.mxu0 0.0
        %1930 = vmatprep.subr.mxu0 0.0
        %1931 = vmatpush1.msra.mxu0 0.0
        %1932 = vmatprep.subr.mxu0 0.0
        %1933 = vmatpush1.msra.mxu0 0.0
        %1934 = vmatprep.subr.mxu0 0.0
        %1935 = vmatpush1.msra.mxu0 0.0
        %1936 = vmatprep.subr.mxu0 0.0
        %1937 = vmatpush1.msra.mxu0 0.0
        %1938 = vmatprep.subr.mxu0 0.0
        %1939 = vmatpush1.msra.mxu0 0.0
        %1940 = vmatprep.subr.mxu0 0.0
        %1941 = vmatpush1.msra.mxu0 0.0
        %1942 = vmatprep.subr.mxu0 0.0
        %1943 = vmatpush1.msra.mxu0 0.0
        %1944 = vmatprep.subr.mxu0 0.0
        %1945 = vmatpush1.msra.mxu0 0.0
        %1946 = vmatprep.subr.mxu0 0.0
        %1947 = vmatpush1.msra.mxu0 0.0
        %1948 = vmatprep.subr.mxu0 0.0
        %1949 = vmatpush1.msra.mxu0 0.0
        %1950 = vmatprep.subr.mxu0 0.0
        %1951 = vmatpush1.msra.mxu0 0.0
        %1952 = vmatprep.subr.mxu0 0.0
        %1953 = vmatpush1.msra.mxu0 0.0
        %1954 = vmatprep.mubr.f32.mxu0 0.0
        %1955 = vmatmul.mubr.f32.gmra.mrb[0].mxu0 %v1879
        %v1956 = vpop.f32.mrb[0].mxu0
        %v1957 = vadd.f32 %v1860, %v1956
        %v1958 = vpop.f32.mrb[0].mxu0
        %v1959 = vadd.f32 %v1860, %v1958
        %1960 = vmatprep.mubr.f32.mxu0 0.0
        %1961 = vmatmul.mubr.f32.gmra.mrb[0].mxu0 %v1882
        %v1962 = vpop.f32.mrb[0].mxu0
        %v1963 = vadd.f32 %v1865, %v1962
        %v1964 = vpop.f32.mrb[0].mxu0
        %v1965 = vadd.f32 %v1865, %v1964
        %1966 = vmatprep.mubr.f32.mxu0 0.0
        %1967 = vmatmul.mubr.f32.gmra.mrb[0].mxu0 %v1885
        %v1968 = vpop.f32.mrb[0].mxu0
        %v1969 = vadd.f32 %v1870, %v1968
        %v1970 = vpop.f32.mrb[0].mxu0
        %v1971 = vadd.f32 %v1870, %v1970
        %1972 = vmatprep.mubr.f32.mxu0 0.0
        %1973 = vmatmul.mubr.f32.gmra.mrb[0].mxu0 %v1888
        %v1974 = vpop.f32.mrb[0].mxu0
        %v1975 = vadd.f32 %v1875, %v1974
        %v1976 = vpop.f32.mrb[0].mxu0
        %v1977 = vadd.f32 %v1875, %v1976
        %1978 = vdwg.mxu0
        %1979 = vmatprep.subr.mxu0 %v1836
        %1980 = vmatpush1.msra.mxu0 %v1835
        %1981 = vmatprep.subr.mxu0 %v1840
        %1982 = vmatpush1.msra.mxu0 %v1839
        %1983 = vmatprep.subr.mxu0 %v1844
        %1984 = vmatpush1.msra.mxu0 %v1843
        %1985 = vmatprep.subr.mxu0 %v1848
        %1986 = vmatpush1.msra.mxu0 %v1847
        %1987 = vmatprep.subr.mxu0 0.0
        %1988 = vmatpush1.msra.mxu0 0.0
        %1989 = vmatprep.subr.mxu0 0.0
        %1990 = vmatpush1.msra.mxu0 0.0
        %1991 = vmatprep.subr.mxu0 0.0
        %1992 = vmatpush1.msra.mxu0 0.0
        %1993 = vmatprep.subr.mxu0 0.0
        %1994 = vmatpush1.msra.mxu0 0.0
        %1995 = vmatprep.subr.mxu0 0.0
        %1996 = vmatpush1.msra.mxu0 0.0
        %1997 = vmatprep.subr.mxu0 0.0
        %1998 = vmatpush1.msra.mxu0 0.0
        %1999 = vmatprep.subr.mxu0 0.0
        %2000 = vmatpush1.msra.mxu0 0.0
        %2001 = vmatprep.subr.mxu0 0.0
        %2002 = vmatpush1.msra.mxu0 0.0
        %2003 = vmatprep.subr.mxu0 0.0
        %2004 = vmatpush1.msra.mxu0 0.0
        %2005 = vmatprep.subr.mxu0 0.0
        %2006 = vmatpush1.msra.mxu0 0.0
        %2007 = vmatprep.subr.mxu0 0.0
        %2008 = vmatpush1.msra.mxu0 0.0
        %2009 = vmatprep.subr.mxu0 0.0
        %2010 = vmatpush1.msra.mxu0 0.0
        %2011 = vmatprep.subr.mxu0 0.0
        %2012 = vmatpush1.msra.mxu0 0.0
        %2013 = vmatprep.subr.mxu0 0.0
        %2014 = vmatpush1.msra.mxu0 0.0
        %2015 = vmatprep.subr.mxu0 0.0
        %2016 = vmatpush1.msra.mxu0 0.0
        %2017 = vmatprep.subr.mxu0 0.0
        %2018 = vmatpush1.msra.mxu0 0.0
        %2019 = vmatprep.subr.mxu0 0.0
        %2020 = vmatpush1.msra.mxu0 0.0
        %2021 = vmatprep.subr.mxu0 0.0
        %2022 = vmatpush1.msra.mxu0 0.0
        %2023 = vmatprep.subr.mxu0 0.0
        %2024 = vmatpush1.msra.mxu0 0.0
        %2025 = vmatprep.subr.mxu0 0.0
        %2026 = vmatpush1.msra.mxu0 0.0
        %2027 = vmatprep.subr.mxu0 0.0
        %2028 = vmatpush1.msra.mxu0 0.0
        %2029 = vmatprep.subr.mxu0 0.0
        %2030 = vmatpush1.msra.mxu0 0.0
        %2031 = vmatprep.subr.mxu0 0.0
        %2032 = vmatpush1.msra.mxu0 0.0
        %2033 = vmatprep.subr.mxu0 0.0
        %2034 = vmatpush1.msra.mxu0 0.0
        %2035 = vmatprep.subr.mxu0 0.0
        %2036 = vmatpush1.msra.mxu0 0.0
        %2037 = vmatprep.subr.mxu0 0.0
        %2038 = vmatpush1.msra.mxu0 0.0
        %2039 = vmatprep.subr.mxu0 0.0
        %2040 = vmatpush1.msra.mxu0 0.0
        %2041 = vmatprep.subr.mxu0 0.0
        %2042 = vmatpush1.msra.mxu0 0.0
        %2043 = vmatprep.mubr.f32.mxu0 0.0
        %2044 = vmatmul.mubr.f32.gmra.mrb[0].mxu0 %v1879
        %v2045 = vpop.f32.mrb[0].mxu0
        %v2046 = vadd.f32 %v1860, %v2045
        %v2047 = vpop.f32.mrb[0].mxu0
        %v2048 = vadd.f32 %v1860, %v2047
        %2049 = vmatprep.mubr.f32.mxu0 0.0
        %2050 = vmatmul.mubr.f32.gmra.mrb[0].mxu0 %v1882
        %v2051 = vpop.f32.mrb[0].mxu0
        %v2052 = vadd.f32 %v1865, %v2051
        %v2053 = vpop.f32.mrb[0].mxu0
        %v2054 = vadd.f32 %v1865, %v2053
        %2055 = vmatprep.mubr.f32.mxu0 0.0
        %2056 = vmatmul.mubr.f32.gmra.mrb[0].mxu0 %v1885
        %v2057 = vpop.f32.mrb[0].mxu0
        %v2058 = vadd.f32 %v1870, %v2057
        %v2059 = vpop.f32.mrb[0].mxu0
        %v2060 = vadd.f32 %v1870, %v2059
        %2061 = vmatprep.mubr.f32.mxu0 0.0
        %2062 = vmatmul.mubr.f32.gmra.mrb[0].mxu0 %v1888
        %v2063 = vpop.f32.mrb[0].mxu0
        %v2064 = vadd.f32 %v1875, %v2063
        %v2065 = vpop.f32.mrb[0].mxu0
        %v2066 = vadd.f32 %v1875, %v2065
        %2067 = vdwg.mxu0
        %v2068 = vxor.u32 %v1957, 2147483648
        %v2069 = vxor.u32 %v1959, 2147483648
        %v2070 = vxor.u32 %v2046, 2147483648
        %v2071 = vxor.u32 %v2048, 2147483648
        %v2072 = vxor.u32 %v1963, 2147483648
        %v2073 = vxor.u32 %v1965, 2147483648
        %v2074 = vxor.u32 %v2052, 2147483648
        %v2075 = vxor.u32 %v2054, 2147483648
        %v2076 = vxor.u32 %v1969, 2147483648
        %v2077 = vxor.u32 %v1971, 2147483648
        %v2078 = vxor.u32 %v2058, 2147483648
        %v2079 = vxor.u32 %v2060, 2147483648
        %v2080 = vxor.u32 %v1975, 2147483648
        %v2081 = vxor.u32 %v1977, 2147483648
        %v2082 = vxor.u32 %v2064, 2147483648
        %v2083 = vxor.u32 %v2066, 2147483648
        %v2084 = vmul.f32 %v2068, 1.442695
        %v2085 = vpow.pop %v2084
        %v2086 = vmul.f32 %v2069, 1.442695
        %v2087 = vpow.pop %v2086
        %v2088 = vmul.f32 %v2070, 1.442695
        %v2089 = vpow.pop %v2088
        %v2090 = vmul.f32 %v2071, 1.442695
        %v2091 = vpow.pop %v2090
        %v2092 = vmul.f32 %v2072, 1.442695
        %v2093 = vpow.pop %v2092
        %v2094 = vmul.f32 %v2073, 1.442695
        %v2095 = vpow.pop %v2094
        %v2096 = vmul.f32 %v2074, 1.442695
        %v2097 = vpow.pop %v2096
        %v2098 = vmul.f32 %v2075, 1.442695
        %v2099 = vpow.pop %v2098
        %v2100 = vmul.f32 %v2076, 1.442695
        %v2101 = vpow.pop %v2100
        %v2102 = vmul.f32 %v2077, 1.442695
        %v2103 = vpow.pop %v2102
        %v2104 = vmul.f32 %v2078, 1.442695
        %v2105 = vpow.pop %v2104
        %v2106 = vmul.f32 %v2079, 1.442695
        %v2107 = vpow.pop %v2106
        %v2108 = vmul.f32 %v2080, 1.442695
        %v2109 = vpow.pop %v2108
        %v2110 = vmul.f32 %v2081, 1.442695
        %v2111 = vpow.pop %v2110
        %v2112 = vmul.f32 %v2082, 1.442695
        %v2113 = vpow.pop %v2112
        %v2114 = vmul.f32 %v2083, 1.442695
        %v2115 = vpow.pop %v2114
        %v2116 = vadd.f32 %v2085, 1.0
        %v2117 = vadd.f32 %v2087, 1.0
        %v2118 = vadd.f32 %v2089, 1.0
        %v2119 = vadd.f32 %v2091, 1.0
        %v2120 = vadd.f32 %v2093, 1.0
        %v2121 = vadd.f32 %v2095, 1.0
        %v2122 = vadd.f32 %v2097, 1.0
        %v2123 = vadd.f32 %v2099, 1.0
        %v2124 = vadd.f32 %v2101, 1.0
        %v2125 = vadd.f32 %v2103, 1.0
        %v2126 = vadd.f32 %v2105, 1.0
        %v2127 = vadd.f32 %v2107, 1.0
        %v2128 = vadd.f32 %v2109, 1.0
        %v2129 = vadd.f32 %v2111, 1.0
        %v2130 = vadd.f32 %v2113, 1.0
        %v2131 = vadd.f32 %v2115, 1.0
        %v2132 = vrcp.pop %v2116
        %v2133 = vmul.f32 1.0, %v2132
        %v2134 = vrcp.pop %v2117
        %v2135 = vmul.f32 1.0, %v2134
        %v2136 = vrcp.pop %v2118
        %v2137 = vmul.f32 1.0, %v2136
        %v2138 = vrcp.pop %v2119
        %v2139 = vmul.f32 1.0, %v2138
        %v2140 = vrcp.pop %v2120
        %v2141 = vmul.f32 1.0, %v2140
        %v2142 = vrcp.pop %v2121
        %v2143 = vmul.f32 1.0, %v2142
        %v2144 = vrcp.pop %v2122
        %v2145 = vmul.f32 1.0, %v2144
        %v2146 = vrcp.pop %v2123
        %v2147 = vmul.f32 1.0, %v2146
        %v2148 = vrcp.pop %v2124
        %v2149 = vmul.f32 1.0, %v2148
        %v2150 = vrcp.pop %v2125
        %v2151 = vmul.f32 1.0, %v2150
        %v2152 = vrcp.pop %v2126
        %v2153 = vmul.f32 1.0, %v2152
        %v2154 = vrcp.pop %v2127
        %v2155 = vmul.f32 1.0, %v2154
        %v2156 = vrcp.pop %v2128
        %v2157 = vmul.f32 1.0, %v2156
        %v2158 = vrcp.pop %v2129
        %v2159 = vmul.f32 1.0, %v2158
        %v2160 = vrcp.pop %v2130
        %v2161 = vmul.f32 1.0, %v2160
        %v2162 = vrcp.pop %v2131
        %v2163 = vmul.f32 1.0, %v2162
        %v2164 = vmul.f32 %v1957, %v2133
        %v2165 = vmul.f32 %v1959, %v2135
        %v2166 = vmul.f32 %v2046, %v2137
        %v2167 = vmul.f32 %v2048, %v2139
        %v2168 = vmul.f32 %v1963, %v2141
        %v2169 = vmul.f32 %v1965, %v2143
        %v2170 = vmul.f32 %v2052, %v2145
        %v2171 = vmul.f32 %v2054, %v2147
        %v2172 = vmul.f32 %v1969, %v2149
        %v2173 = vmul.f32 %v1971, %v2151
        %v2174 = vmul.f32 %v2058, %v2153
        %v2175 = vmul.f32 %v2060, %v2155
        %v2176 = vmul.f32 %v1975, %v2157
        %v2177 = vmul.f32 %v1977, %v2159
        %v2178 = vmul.f32 %v2064, %v2161
        %v2179 = vmul.f32 %v2066, %v2163
        %v2180 = vld [vmem:[%s7] sm:$0xff]
        %v2181 = vld [vmem:[%s7 + $0x8] sm:$0xff]
        %v2182 = vld [vmem:[%s7 + $0x10] sm:$0xff]
        %v2183 = vld [vmem:[%s7 + $0x18] sm:$0xff]
        %v2184 = vld [vmem:[%s8] sm:$0xff]
        %v2185 = vld [vmem:[%s8 + $0x8] sm:$0xff]
        %v2186 = vld [vmem:[%s8 + $0x10] sm:$0xff]
        %v2187 = vld [vmem:[%s8 + $0x18] sm:$0xff]
        %2189 = vset.pattern.permute.xlu0 0
        %2190 = vperm.xlu0 %2189, %v2184
        %v2191 = vpop.permute.xlu0 %2190
        %2194 = vset.pattern.permute.xlu0 0
        %2195 = vperm.xlu0 %2194, %v2185
        %v2196 = vpop.permute.xlu0 %2195
        %2199 = vset.pattern.permute.xlu0 0
        %2200 = vperm.xlu0 %2199, %v2186
        %v2201 = vpop.permute.xlu0 %2200
        %2204 = vset.pattern.permute.xlu0 0
        %2205 = vperm.xlu0 %2204, %v2187
        %v2206 = vpop.permute.xlu0 %2205
        %v2209 = vsel %vm1877, %v2180, 0
        %v2212 = vsel %vm1877, %v2181, 0
        %v2215 = vsel %vm1877, %v2182, 0
        %v2218 = vsel %vm1877, %v2183, 0
        %2220 = vmatprep.subr.mxu0 %v2165
        %2221 = vmatpush1.msra.mxu0 %v2164
        %2222 = vmatprep.subr.mxu0 %v2169
        %2223 = vmatpush1.msra.mxu0 %v2168
        %2224 = vmatprep.subr.mxu0 %v2173
        %2225 = vmatpush1.msra.mxu0 %v2172
        %2226 = vmatprep.subr.mxu0 %v2177
        %2227 = vmatpush1.msra.mxu0 %v2176
        %2228 = vmatprep.subr.mxu0 0.0
        %2229 = vmatpush1.msra.mxu0 0.0
        %2230 = vmatprep.subr.mxu0 0.0
        %2231 = vmatpush1.msra.mxu0 0.0
        %2232 = vmatprep.subr.mxu0 0.0
        %2233 = vmatpush1.msra.mxu0 0.0
        %2234 = vmatprep.subr.mxu0 0.0
        %2235 = vmatpush1.msra.mxu0 0.0
        %2236 = vmatprep.subr.mxu0 0.0
        %2237 = vmatpush1.msra.mxu0 0.0
        %2238 = vmatprep.subr.mxu0 0.0
        %2239 = vmatpush1.msra.mxu0 0.0
        %2240 = vmatprep.subr.mxu0 0.0
        %2241 = vmatpush1.msra.mxu0 0.0
        %2242 = vmatprep.subr.mxu0 0.0
        %2243 = vmatpush1.msra.mxu0 0.0
        %2244 = vmatprep.subr.mxu0 0.0
        %2245 = vmatpush1.msra.mxu0 0.0
        %2246 = vmatprep.subr.mxu0 0.0
        %2247 = vmatpush1.msra.mxu0 0.0
        %2248 = vmatprep.subr.mxu0 0.0
        %2249 = vmatpush1.msra.mxu0 0.0
        %2250 = vmatprep.subr.mxu0 0.0
        %2251 = vmatpush1.msra.mxu0 0.0
        %2252 = vmatprep.subr.mxu0 0.0
        %2253 = vmatpush1.msra.mxu0 0.0
        %2254 = vmatprep.subr.mxu0 0.0
        %2255 = vmatpush1.msra.mxu0 0.0
        %2256 = vmatprep.subr.mxu0 0.0
        %2257 = vmatpush1.msra.mxu0 0.0
        %2258 = vmatprep.subr.mxu0 0.0
        %2259 = vmatpush1.msra.mxu0 0.0
        %2260 = vmatprep.subr.mxu0 0.0
        %2261 = vmatpush1.msra.mxu0 0.0
        %2262 = vmatprep.subr.mxu0 0.0
        %2263 = vmatpush1.msra.mxu0 0.0
        %2264 = vmatprep.subr.mxu0 0.0
        %2265 = vmatpush1.msra.mxu0 0.0
        %2266 = vmatprep.subr.mxu0 0.0
        %2267 = vmatpush1.msra.mxu0 0.0
        %2268 = vmatprep.subr.mxu0 0.0
        %2269 = vmatpush1.msra.mxu0 0.0
        %2270 = vmatprep.subr.mxu0 0.0
        %2271 = vmatpush1.msra.mxu0 0.0
        %2272 = vmatprep.subr.mxu0 0.0
        %2273 = vmatpush1.msra.mxu0 0.0
        %2274 = vmatprep.subr.mxu0 0.0
        %2275 = vmatpush1.msra.mxu0 0.0
        %2276 = vmatprep.subr.mxu0 0.0
        %2277 = vmatpush1.msra.mxu0 0.0
        %2278 = vmatprep.subr.mxu0 0.0
        %2279 = vmatpush1.msra.mxu0 0.0
        %2280 = vmatprep.subr.mxu0 0.0
        %2281 = vmatpush1.msra.mxu0 0.0
        %2282 = vmatprep.subr.mxu0 0.0
        %2283 = vmatpush1.msra.mxu0 0.0
        %2284 = vmatprep.mubr.f32.mxu0 0.0
        %2285 = vmatmul.mubr.f32.gmra.mrb[0].mxu0 %v2209
        %v2286 = vpop.f32.mrb[0].mxu0
        %v2287 = vadd.f32 %v2191, %v2286
        %v2288 = vpop.f32.mrb[0].mxu0
        %v2289 = vadd.f32 %v2191, %v2288
        %2290 = vmatprep.mubr.f32.mxu0 0.0
        %2291 = vmatmul.mubr.f32.gmra.mrb[0].mxu0 %v2212
        %v2292 = vpop.f32.mrb[0].mxu0
        %v2293 = vadd.f32 %v2196, %v2292
        %v2294 = vpop.f32.mrb[0].mxu0
        %v2295 = vadd.f32 %v2196, %v2294
        %2296 = vmatprep.mubr.f32.mxu0 0.0
        %2297 = vmatmul.mubr.f32.gmra.mrb[0].mxu0 %v2215
        %v2298 = vpop.f32.mrb[0].mxu0
        %v2299 = vadd.f32 %v2201, %v2298
        %v2300 = vpop.f32.mrb[0].mxu0
        %v2301 = vadd.f32 %v2201, %v2300
        %2302 = vmatprep.mubr.f32.mxu0 0.0
        %2303 = vmatmul.mubr.f32.gmra.mrb[0].mxu0 %v2218
        %v2304 = vpop.f32.mrb[0].mxu0
        %v2305 = vadd.f32 %v2206, %v2304
        %v2306 = vpop.f32.mrb[0].mxu0
        %v2307 = vadd.f32 %v2206, %v2306
        %2308 = vdwg.mxu0
        %2309 = vmatprep.subr.mxu0 %v2167
        %2310 = vmatpush1.msra.mxu0 %v2166
        %2311 = vmatprep.subr.mxu0 %v2171
        %2312 = vmatpush1.msra.mxu0 %v2170
        %2313 = vmatprep.subr.mxu0 %v2175
        %2314 = vmatpush1.msra.mxu0 %v2174
        %2315 = vmatprep.subr.mxu0 %v2179
        %2316 = vmatpush1.msra.mxu0 %v2178
        %2317 = vmatprep.subr.mxu0 0.0
        %2318 = vmatpush1.msra.mxu0 0.0
        %2319 = vmatprep.subr.mxu0 0.0
        %2320 = vmatpush1.msra.mxu0 0.0
        %2321 = vmatprep.subr.mxu0 0.0
        %2322 = vmatpush1.msra.mxu0 0.0
        %2323 = vmatprep.subr.mxu0 0.0
        %2324 = vmatpush1.msra.mxu0 0.0
        %2325 = vmatprep.subr.mxu0 0.0
        %2326 = vmatpush1.msra.mxu0 0.0
        %2327 = vmatprep.subr.mxu0 0.0
        %2328 = vmatpush1.msra.mxu0 0.0
        %2329 = vmatprep.subr.mxu0 0.0
        %2330 = vmatpush1.msra.mxu0 0.0
        %2331 = vmatprep.subr.mxu0 0.0
        %2332 = vmatpush1.msra.mxu0 0.0
        %2333 = vmatprep.subr.mxu0 0.0
        %2334 = vmatpush1.msra.mxu0 0.0
        %2335 = vmatprep.subr.mxu0 0.0
        %2336 = vmatpush1.msra.mxu0 0.0
        %2337 = vmatprep.subr.mxu0 0.0
        %2338 = vmatpush1.msra.mxu0 0.0
        %2339 = vmatprep.subr.mxu0 0.0
        %2340 = vmatpush1.msra.mxu0 0.0
        %2341 = vmatprep.subr.mxu0 0.0
        %2342 = vmatpush1.msra.mxu0 0.0
        %2343 = vmatprep.subr.mxu0 0.0
        %2344 = vmatpush1.msra.mxu0 0.0
        %2345 = vmatprep.subr.mxu0 0.0
        %2346 = vmatpush1.msra.mxu0 0.0
        %2347 = vmatprep.subr.mxu0 0.0
        %2348 = vmatpush1.msra.mxu0 0.0
        %2349 = vmatprep.subr.mxu0 0.0
        %2350 = vmatpush1.msra.mxu0 0.0
        %2351 = vmatprep.subr.mxu0 0.0
        %2352 = vmatpush1.msra.mxu0 0.0
        %2353 = vmatprep.subr.mxu0 0.0
        %2354 = vmatpush1.msra.mxu0 0.0
        %2355 = vmatprep.subr.mxu0 0.0
        %2356 = vmatpush1.msra.mxu0 0.0
        %2357 = vmatprep.subr.mxu0 0.0
        %2358 = vmatpush1.msra.mxu0 0.0
        %2359 = vmatprep.subr.mxu0 0.0
        %2360 = vmatpush1.msra.mxu0 0.0
        %2361 = vmatprep.subr.mxu0 0.0
        %2362 = vmatpush1.msra.mxu0 0.0
        %2363 = vmatprep.subr.mxu0 0.0
        %2364 = vmatpush1.msra.mxu0 0.0
        %2365 = vmatprep.subr.mxu0 0.0
        %2366 = vmatpush1.msra.mxu0 0.0
        %2367 = vmatprep.subr.mxu0 0.0
        %2368 = vmatpush1.msra.mxu0 0.0
        %2369 = vmatprep.subr.mxu0 0.0
        %2370 = vmatpush1.msra.mxu0 0.0
        %2371 = vmatprep.subr.mxu0 0.0
        %2372 = vmatpush1.msra.mxu0 0.0
        %2373 = vmatprep.mubr.f32.mxu0 0.0
        %2374 = vmatmul.mubr.f32.gmra.mrb[0].mxu0 %v2209
        %v2375 = vpop.f32.mrb[0].mxu0
        %v2376 = vadd.f32 %v2191, %v2375
        %v2377 = vpop.f32.mrb[0].mxu0
        %v2378 = vadd.f32 %v2191, %v2377
        %2379 = vmatprep.mubr.f32.mxu0 0.0
        %2380 = vmatmul.mubr.f32.gmra.mrb[0].mxu0 %v2212
        %v2381 = vpop.f32.mrb[0].mxu0
        %v2382 = vadd.f32 %v2196, %v2381
        %v2383 = vpop.f32.mrb[0].mxu0
        %v2384 = vadd.f32 %v2196, %v2383
        %2385 = vmatprep.mubr.f32.mxu0 0.0
        %2386 = vmatmul.mubr.f32.gmra.mrb[0].mxu0 %v2215
        %v2387 = vpop.f32.mrb[0].mxu0
        %v2388 = vadd.f32 %v2201, %v2387
        %v2389 = vpop.f32.mrb[0].mxu0
        %v2390 = vadd.f32 %v2201, %v2389
        %2391 = vmatprep.mubr.f32.mxu0 0.0
        %2392 = vmatmul.mubr.f32.gmra.mrb[0].mxu0 %v2218
        %v2393 = vpop.f32.mrb[0].mxu0
        %v2394 = vadd.f32 %v2206, %v2393
        %v2395 = vpop.f32.mrb[0].mxu0
        %v2396 = vadd.f32 %v2206, %v2395
        %2397 = vdwg.mxu0
        %v2398 = vxor.u32 %v2287, 2147483648
        %v2399 = vxor.u32 %v2289, 2147483648
        %v2400 = vxor.u32 %v2376, 2147483648
        %v2401 = vxor.u32 %v2378, 2147483648
        %v2402 = vxor.u32 %v2293, 2147483648
        %v2403 = vxor.u32 %v2295, 2147483648
        %v2404 = vxor.u32 %v2382, 2147483648
        %v2405 = vxor.u32 %v2384, 2147483648
        %v2406 = vxor.u32 %v2299, 2147483648
        %v2407 = vxor.u32 %v2301, 2147483648
        %v2408 = vxor.u32 %v2388, 2147483648
        %v2409 = vxor.u32 %v2390, 2147483648
        %v2410 = vxor.u32 %v2305, 2147483648
        %v2411 = vxor.u32 %v2307, 2147483648
        %v2412 = vxor.u32 %v2394, 2147483648
        %v2413 = vxor.u32 %v2396, 2147483648
        %v2414 = vmul.f32 %v2398, 1.442695
        %v2415 = vpow.pop %v2414
        %v2416 = vmul.f32 %v2399, 1.442695
        %v2417 = vpow.pop %v2416
        %v2418 = vmul.f32 %v2400, 1.442695
        %v2419 = vpow.pop %v2418
        %v2420 = vmul.f32 %v2401, 1.442695
        %v2421 = vpow.pop %v2420
        %v2422 = vmul.f32 %v2402, 1.442695
        %v2423 = vpow.pop %v2422
        %v2424 = vmul.f32 %v2403, 1.442695
        %v2425 = vpow.pop %v2424
        %v2426 = vmul.f32 %v2404, 1.442695
        %v2427 = vpow.pop %v2426
        %v2428 = vmul.f32 %v2405, 1.442695
        %v2429 = vpow.pop %v2428
        %v2430 = vmul.f32 %v2406, 1.442695
        %v2431 = vpow.pop %v2430
        %v2432 = vmul.f32 %v2407, 1.442695
        %v2433 = vpow.pop %v2432
        %v2434 = vmul.f32 %v2408, 1.442695
        %v2435 = vpow.pop %v2434
        %v2436 = vmul.f32 %v2409, 1.442695
        %v2437 = vpow.pop %v2436
        %v2438 = vmul.f32 %v2410, 1.442695
        %v2439 = vpow.pop %v2438
        %v2440 = vmul.f32 %v2411, 1.442695
        %v2441 = vpow.pop %v2440
        %v2442 = vmul.f32 %v2412, 1.442695
        %v2443 = vpow.pop %v2442
        %v2444 = vmul.f32 %v2413, 1.442695
        %v2445 = vpow.pop %v2444
        %v2446 = vadd.f32 %v2415, 1.0
        %v2447 = vadd.f32 %v2417, 1.0
        %v2448 = vadd.f32 %v2419, 1.0
        %v2449 = vadd.f32 %v2421, 1.0
        %v2450 = vadd.f32 %v2423, 1.0
        %v2451 = vadd.f32 %v2425, 1.0
        %v2452 = vadd.f32 %v2427, 1.0
        %v2453 = vadd.f32 %v2429, 1.0
        %v2454 = vadd.f32 %v2431, 1.0
        %v2455 = vadd.f32 %v2433, 1.0
        %v2456 = vadd.f32 %v2435, 1.0
        %v2457 = vadd.f32 %v2437, 1.0
        %v2458 = vadd.f32 %v2439, 1.0
        %v2459 = vadd.f32 %v2441, 1.0
        %v2460 = vadd.f32 %v2443, 1.0
        %v2461 = vadd.f32 %v2445, 1.0
        %v2462 = vrcp.pop %v2446
        %v2463 = vmul.f32 1.0, %v2462
        %v2464 = vrcp.pop %v2447
        %v2465 = vmul.f32 1.0, %v2464
        %v2466 = vrcp.pop %v2448
        %v2467 = vmul.f32 1.0, %v2466
        %v2468 = vrcp.pop %v2449
        %v2469 = vmul.f32 1.0, %v2468
        %v2470 = vrcp.pop %v2450
        %v2471 = vmul.f32 1.0, %v2470
        %v2472 = vrcp.pop %v2451
        %v2473 = vmul.f32 1.0, %v2472
        %v2474 = vrcp.pop %v2452
        %v2475 = vmul.f32 1.0, %v2474
        %v2476 = vrcp.pop %v2453
        %v2477 = vmul.f32 1.0, %v2476
        %v2478 = vrcp.pop %v2454
        %v2479 = vmul.f32 1.0, %v2478
        %v2480 = vrcp.pop %v2455
        %v2481 = vmul.f32 1.0, %v2480
        %v2482 = vrcp.pop %v2456
        %v2483 = vmul.f32 1.0, %v2482
        %v2484 = vrcp.pop %v2457
        %v2485 = vmul.f32 1.0, %v2484
        %v2486 = vrcp.pop %v2458
        %v2487 = vmul.f32 1.0, %v2486
        %v2488 = vrcp.pop %v2459
        %v2489 = vmul.f32 1.0, %v2488
        %v2490 = vrcp.pop %v2460
        %v2491 = vmul.f32 1.0, %v2490
        %v2492 = vrcp.pop %v2461
        %v2493 = vmul.f32 1.0, %v2492
        %v2494 = vmul.f32 %v2287, %v2463
        %v2495 = vmul.f32 %v2289, %v2465
        %v2496 = vmul.f32 %v2376, %v2467
        %v2497 = vmul.f32 %v2378, %v2469
        %v2498 = vmul.f32 %v2293, %v2471
        %v2499 = vmul.f32 %v2295, %v2473
        %v2500 = vmul.f32 %v2382, %v2475
        %v2501 = vmul.f32 %v2384, %v2477
        %v2502 = vmul.f32 %v2299, %v2479
        %v2503 = vmul.f32 %v2301, %v2481
        %v2504 = vmul.f32 %v2388, %v2483
        %v2505 = vmul.f32 %v2390, %v2485
        %v2506 = vmul.f32 %v2305, %v2487
        %v2507 = vmul.f32 %v2307, %v2489
        %v2508 = vmul.f32 %v2394, %v2491
        %v2509 = vmul.f32 %v2396, %v2493
        %v2510 = vld [vmem:[%s9] sm:$0x7]
        %v2511 = vld [vmem:[%s10] sm:$0x7]
        %2513 = vset.pattern.permute.xlu0 0
        %2514 = vperm.xlu0 %2513, %v2511
        %v2515 = vpop.permute.xlu0 %2514
        %v2518 = vsel %vm1877, %v2510, 0
        %2520 = vmatprep.subr.mxu0 %v2495
        %2521 = vmatpush1.msra.mxu0 %v2494
        %2522 = vmatprep.subr.mxu0 %v2499
        %2523 = vmatpush1.msra.mxu0 %v2498
        %2524 = vmatprep.subr.mxu0 %v2503
        %2525 = vmatpush1.msra.mxu0 %v2502
        %2526 = vmatprep.subr.mxu0 %v2507
        %2527 = vmatpush1.msra.mxu0 %v2506
        %2528 = vmatprep.subr.mxu0 0.0
        %2529 = vmatpush1.msra.mxu0 0.0
        %2530 = vmatprep.subr.mxu0 0.0
        %2531 = vmatpush1.msra.mxu0 0.0
        %2532 = vmatprep.subr.mxu0 0.0
        %2533 = vmatpush1.msra.mxu0 0.0
        %2534 = vmatprep.subr.mxu0 0.0
        %2535 = vmatpush1.msra.mxu0 0.0
        %2536 = vmatprep.subr.mxu0 0.0
        %2537 = vmatpush1.msra.mxu0 0.0
        %2538 = vmatprep.subr.mxu0 0.0
        %2539 = vmatpush1.msra.mxu0 0.0
        %2540 = vmatprep.subr.mxu0 0.0
        %2541 = vmatpush1.msra.mxu0 0.0
        %2542 = vmatprep.subr.mxu0 0.0
        %2543 = vmatpush1.msra.mxu0 0.0
        %2544 = vmatprep.subr.mxu0 0.0
        %2545 = vmatpush1.msra.mxu0 0.0
        %2546 = vmatprep.subr.mxu0 0.0
        %2547 = vmatpush1.msra.mxu0 0.0
        %2548 = vmatprep.subr.mxu0 0.0
        %2549 = vmatpush1.msra.mxu0 0.0
        %2550 = vmatprep.subr.mxu0 0.0
        %2551 = vmatpush1.msra.mxu0 0.0
        %2552 = vmatprep.subr.mxu0 0.0
        %2553 = vmatpush1.msra.mxu0 0.0
        %2554 = vmatprep.subr.mxu0 0.0
        %2555 = vmatpush1.msra.mxu0 0.0
        %2556 = vmatprep.subr.mxu0 0.0
        %2557 = vmatpush1.msra.mxu0 0.0
        %2558 = vmatprep.subr.mxu0 0.0
        %2559 = vmatpush1.msra.mxu0 0.0
        %2560 = vmatprep.subr.mxu0 0.0
        %2561 = vmatpush1.msra.mxu0 0.0
        %2562 = vmatprep.subr.mxu0 0.0
        %2563 = vmatpush1.msra.mxu0 0.0
        %2564 = vmatprep.subr.mxu0 0.0
        %2565 = vmatpush1.msra.mxu0 0.0
        %2566 = vmatprep.subr.mxu0 0.0
        %2567 = vmatpush1.msra.mxu0 0.0
        %2568 = vmatprep.subr.mxu0 0.0
        %2569 = vmatpush1.msra.mxu0 0.0
        %2570 = vmatprep.subr.mxu0 0.0
        %2571 = vmatpush1.msra.mxu0 0.0
        %2572 = vmatprep.subr.mxu0 0.0
        %2573 = vmatpush1.msra.mxu0 0.0
        %2574 = vmatprep.subr.mxu0 0.0
        %2575 = vmatpush1.msra.mxu0 0.0
        %2576 = vmatprep.subr.mxu0 0.0
        %2577 = vmatpush1.msra.mxu0 0.0
        %2578 = vmatprep.subr.mxu0 0.0
        %2579 = vmatpush1.msra.mxu0 0.0
        %2580 = vmatprep.subr.mxu0 0.0
        %2581 = vmatpush1.msra.mxu0 0.0
        %2582 = vmatprep.subr.mxu0 0.0
        %2583 = vmatpush1.msra.mxu0 0.0
        %2584 = vmatprep.mubr.f32.mxu0 0.0
        %2585 = vmatmul.mubr.f32.gmra.mrb[0].mxu0 %v2518
        %v2586 = vpop.f32.mrb[0].mxu0
        %v2587 = vadd.f32 %v2515, %v2586
        %v2588 = vpop.f32.mrb[0].mxu0
        %v2589 = vadd.f32 %v2515, %v2588
        %2590 = vdwg.mxu0
        %2591 = vmatprep.subr.mxu0 %v2497
        %2592 = vmatpush1.msra.mxu0 %v2496
        %2593 = vmatprep.subr.mxu0 %v2501
        %2594 = vmatpush1.msra.mxu0 %v2500
        %2595 = vmatprep.subr.mxu0 %v2505
        %2596 = vmatpush1.msra.mxu0 %v2504
        %2597 = vmatprep.subr.mxu0 %v2509
        %2598 = vmatpush1.msra.mxu0 %v2508
        %2599 = vmatprep.subr.mxu0 0.0
        %2600 = vmatpush1.msra.mxu0 0.0
        %2601 = vmatprep.subr.mxu0 0.0
        %2602 = vmatpush1.msra.mxu0 0.0
        %2603 = vmatprep.subr.mxu0 0.0
        %2604 = vmatpush1.msra.mxu0 0.0
        %2605 = vmatprep.subr.mxu0 0.0
        %2606 = vmatpush1.msra.mxu0 0.0
        %2607 = vmatprep.subr.mxu0 0.0
        %2608 = vmatpush1.msra.mxu0 0.0
        %2609 = vmatprep.subr.mxu0 0.0
        %2610 = vmatpush1.msra.mxu0 0.0
        %2611 = vmatprep.subr.mxu0 0.0
        %2612 = vmatpush1.msra.mxu0 0.0
        %2613 = vmatprep.subr.mxu0 0.0
        %2614 = vmatpush1.msra.mxu0 0.0
        %2615 = vmatprep.subr.mxu0 0.0
        %2616 = vmatpush1.msra.mxu0 0.0
        %2617 = vmatprep.subr.mxu0 0.0
        %2618 = vmatpush1.msra.mxu0 0.0
        %2619 = vmatprep.subr.mxu0 0.0
        %2620 = vmatpush1.msra.mxu0 0.0
        %2621 = vmatprep.subr.mxu0 0.0
        %2622 = vmatpush1.msra.mxu0 0.0
        %2623 = vmatprep.subr.mxu0 0.0
        %2624 = vmatpush1.msra.mxu0 0.0
        %2625 = vmatprep.subr.mxu0 0.0
        %2626 = vmatpush1.msra.mxu0 0.0
        %2627 = vmatprep.subr.mxu0 0.0
        %2628 = vmatpush1.msra.mxu0 0.0
        %2629 = vmatprep.subr.mxu0 0.0
        %2630 = vmatpush1.msra.mxu0 0.0
        %2631 = vmatprep.subr.mxu0 0.0
        %2632 = vmatpush1.msra.mxu0 0.0
        %2633 = vmatprep.subr.mxu0 0.0
        %2634 = vmatpush1.msra.mxu0 0.0
        %2635 = vmatprep.subr.mxu0 0.0
        %2636 = vmatpush1.msra.mxu0 0.0
        %2637 = vmatprep.subr.mxu0 0.0
        %2638 = vmatpush1.msra.mxu0 0.0
        %2639 = vmatprep.subr.mxu0 0.0
        %2640 = vmatpush1.msra.mxu0 0.0
        %2641 = vmatprep.subr.mxu0 0.0
        %2642 = vmatpush1.msra.mxu0 0.0
        %2643 = vmatprep.subr.mxu0 0.0
        %2644 = vmatpush1.msra.mxu0 0.0
        %2645 = vmatprep.subr.mxu0 0.0
        %2646 = vmatpush1.msra.mxu0 0.0
        %2647 = vmatprep.subr.mxu0 0.0
        %2648 = vmatpush1.msra.mxu0 0.0
        %2649 = vmatprep.subr.mxu0 0.0
        %2650 = vmatpush1.msra.mxu0 0.0
        %2651 = vmatprep.subr.mxu0 0.0
        %2652 = vmatpush1.msra.mxu0 0.0
        %2653 = vmatprep.subr.mxu0 0.0
        %2654 = vmatpush1.msra.mxu0 0.0
        %2655 = vmatprep.mubr.f32.mxu0 0.0
        %2656 = vmatmul.mubr.f32.gmra.mrb[0].mxu0 %v2518
        %v2657 = vpop.f32.mrb[0].mxu0
        %v2658 = vadd.f32 %v2515, %v2657
        %v2659 = vpop.f32.mrb[0].mxu0
        %v2660 = vadd.f32 %v2515, %v2659
        %2661 = vdwg.mxu0
        %v2666 = vcombine.low %v2587, %v2589
        %v2667 = vcombine.low %v2658, %v2660
        %2670 = vst [vmem:[%s380] sm:$0x77] %v2666
        %2671 = vst [vmem:[%s380 + $0x8] sm:$0x77] %v2667
        %s2672 = sand.u32 %s269, 1
        %s2673 = scalar_lea.sflag [#allocation3], %s2672
        %s2674 = sand.u32 %s269, 1
        %s2675 = smul.addr %s2674, 16
        %s2676 = scalar_lea.vmem [#allocation2], %s2675
        // Predicated region
        $region65: #{tpu_custom_call.1} parent=63 // pred_check
          %p2677 = pneg %p279
        $region66: #{tpu_custom_call.1} parent=63 // pred_check_branch
          %2679 = sbr.rel (%p2677) target = $region68
        $region67: #{tpu_custom_call.1} parent=63 // pred_region
          %s2680 = smul.u32 4, %s25
          %s2682 = ssub.s32 256, 256
          %2683 = vsyncadd %s2673, %s2682
          %s2684 = smul.addr %s2680, 64
          %s2685 = scalar_lea.hbm %s11, %s2684
          %s2687 = sshll.u32 %s2676, 4
          %s2688 = int_to_ptr.vmem [resolvable:$true] %s2687
          %2690 = dma.vmem_to_hbm [thread:$0]  %s2688, 256, %s2685, %s2673
        $region68: #{tpu_custom_call.1} parent=63 // pred_fallthru
          _
      $region64: #{tpu_custom_call.1} parent=5 // pred_fallthru
        _
      %p2691 = scmp.le.s32.totalorder 2, %s20
      // Predicated region
      $region69: #{tpu_custom_call.1} parent=5 // pred_check
        %p2692 = pneg %p2691
      $region70: #{tpu_custom_call.1} parent=5 // pred_check_branch
        %2694 = sbr.rel (%p2692) target = $region72
      $region71: #{tpu_custom_call.1} parent=5 // pred_region
        %s2695 = ssub.s32 %s20, 2
        // Predicated region
        $region73: #{tpu_custom_call.1} parent=71 // pred_check
          %p2696 = pneg %p285
        $region74: #{tpu_custom_call.1} parent=71 // pred_check_branch
          %2698 = sbr.rel (%p2696) target = $region76
        $region75: #{tpu_custom_call.1} parent=71 // pred_region
          %s2699 = sand.u32 %s270, 1
          %s2700 = scalar_lea.sflag [#allocation3], %s2699
          %s2701 = sand.u32 %s270, 1
          %s2702 = smul.addr %s2701, 16
          %s2703 = scalar_lea.vmem [#allocation2], %s2702
          %2704 = dma.done %s2700, 256
        $region76: #{tpu_custom_call.1} parent=71 // pred_fallthru
          _
      $region72: #{tpu_custom_call.1} parent=5 // pred_fallthru
        _
    $region6: #{tpu_custom_call.1} parent=1 // loop_footer
      %s24 = sadd.s32 1, %s20
    $region7: #{tpu_custom_call.1} parent=1 // loop_footer_branch
      %19 = sbr.rel target = $region3
    $region8: #{tpu_custom_call.1} parent=1 // loop_exit
      _
    %2705 = vsyncpa [#allocation3], 1
    %s2706 = scalar_lea.sflag [#allocation3], 1
    %2707 = vsyncpa %s2706, 1

</llo_original>
